<compile_context>
chip_gen: v5e
topology: v5e:2x2
jax: 0.10.0
libtpu: 0.0.40
codegen_flags: <defaults>
</compile_context>

<pallas_src>
import functools

import jax
import jax.numpy as jnp
from jax.experimental import pallas as pl
from jax.experimental.pallas import tpu as pltpu


# ---------------------------------------------------------------------------
# Kernel
# ---------------------------------------------------------------------------
def _layernorm(x, gamma, beta, eps=1e-5):
    mean = jnp.mean(x, axis=-1, keepdims=True)
    var = jnp.mean(jnp.square(x - mean), axis=-1, keepdims=True)
    return (x - mean) * jax.lax.rsqrt(var + eps) * gamma + beta


def fused_lm_layer_kernel(x_ref,
                          wqkv_ref, bqkv_ref, wo_ref, bo_ref,
                          w1_ref, b1_ref, w2_ref, b2_ref,
                          g1_ref, be1_ref, g2_ref, be2_ref,
                          wout_ref, bout_ref,
                          o_ref,
                          x_slab, ctx_buf,
                          *, nhead, voc_size):
    """One (batch_group, layer) grid step of the post-LN causal encoder stack.

    Grid: (num_batch_groups ["parallel"], num_layers ["arbitrary"]).
    x_slab (VMEM scratch) carries the residual stream across the layer axis; the
    LM head + log_softmax run only under pl.when on the last layer.
    """
    l = pl.program_id(1)
    num_layers = pl.num_programs(1)
    Bg, S, D = x_ref.shape
    Dh = D // nhead
    BS = Bg * S

    # Load the embedded inputs into the resident activation slab at the first layer.
    @pl.when(l == 0)
    def _():
        x_slab[...] = x_ref[...].reshape(BS, D)

    # Causal mask (torch.triu(..., diagonal=1) -> -inf), built + broadcast ONCE per layer
    # (safe: every row keeps its diagonal unmasked).
    row = jax.lax.broadcasted_iota(jnp.int32, (S, S), 0)
    col = jax.lax.broadcasted_iota(jnp.int32, (S, S), 1)
    neg_mask = jnp.broadcast_to(
        jnp.where(col > row, -jnp.inf, 0.0).astype(jnp.float32), (Bg, S, S))

    xf = x_slab[...]                                                     # (BS, D) f32

    # ---- self-attention: fused QKV projection (1/sqrt(Dh) pre-folded into Q weights) ----
    qkv = jnp.dot(xf.astype(jnp.bfloat16), wqkv_ref[0],
                  preferred_element_type=jnp.float32) + bqkv_ref[0]      # (BS, 3D) f32
    qkv_b = qkv.astype(jnp.bfloat16)

    for h in range(nhead):                                               # static unroll
        qh = qkv_b[:, h * Dh:(h + 1) * Dh].reshape(Bg, S, Dh)
        kh = qkv_b[:, D + h * Dh:D + (h + 1) * Dh].reshape(Bg, S, Dh)
        vh = qkv_b[:, 2 * D + h * Dh:2 * D + (h + 1) * Dh].reshape(Bg, S, Dh)
        s = jnp.einsum('bqd,bkd->bqk', qh, kh,
                       preferred_element_type=jnp.float32) + neg_mask
        s = s - jnp.max(s, axis=-1, keepdims=True)
        p = jnp.exp(s)
        p = p * pl.reciprocal(jnp.sum(p, axis=-1, keepdims=True), approx=True)
        ctx_h = jnp.einsum('bqk,bkd->bqd', p.astype(jnp.bfloat16), vh,
                           preferred_element_type=jnp.float32)
        # write into the preallocated context buffer (no lane-dim concat relayout)
        ctx_buf[:, h * Dh:(h + 1) * Dh] = ctx_h.reshape(BS, Dh)

    attn = jnp.dot(ctx_buf[...].astype(jnp.bfloat16), wo_ref[0],
                   preferred_element_type=jnp.float32) + bo_ref[0]

    # residual + norm1 (post-LN, torch TransformerEncoderLayer default, eps=1e-5)
    x1 = _layernorm(xf + attn, g1_ref[0], be1_ref[0])

    # feed-forward: linear1 -> relu -> linear2
    hid = jnp.maximum(
        jnp.dot(x1.astype(jnp.bfloat16), w1_ref[0],
                preferred_element_type=jnp.float32) + b1_ref[0], 0.0)
    ff = jnp.dot(hid.astype(jnp.bfloat16), w2_ref[0],
                 preferred_element_type=jnp.float32) + b2_ref[0]

    # residual + norm2 -> new residual stream (persists to the next layer grid step)
    x2 = _layernorm(x1 + ff, g2_ref[0], be2_ref[0])
    x_slab[...] = x2

    # ---- LM head + log_softmax on the last-token states, last layer only ----
    # TODO(synk): the final layer's FFN/out-proj could be restricted to the Bg last-token
    # rows to shave ~1/(2*num_layers) of the FLOPs; kept full-width for simplicity.
    @pl.when(l == num_layers - 1)
    def _():
        x_last = x2.reshape(Bg, S, D)[:, S - 1:S, :].reshape(Bg, D)      # (Bg, D)
        logits = jnp.dot(x_last.astype(jnp.bfloat16), wout_ref[...],
                         preferred_element_type=jnp.float32) + bout_ref[...]
        Vp = logits.shape[-1]
        vcol = jax.lax.broadcasted_iota(jnp.int32, (Bg, Vp), 1)
        logits = jnp.where(vcol < voc_size, logits, -1e30)               # kill pad columns
        z = logits - jnp.max(logits, axis=-1, keepdims=True)
        lse = jnp.log(jnp.sum(jnp.exp(z), axis=-1, keepdims=True))
        o_ref[0] = z - lse


# ---------------------------------------------------------------------------
# Wrappers
# ---------------------------------------------------------------------------
def prepare_params(params, voc_size, nhead):
    """One-time layout plumbing: stack per-layer weights with a leading layer axis,
    pre-transpose matmul weights to (in, out), fold 1/sqrt(Dh) into the Q projection,
    cast matmul weights to bf16, pad the vocab dim to a lane-dense multiple of 128."""
    layers = params["layers"]
    V, D = params["out_w"].shape
    scale = 1.0 / float(D // nhead) ** 0.5

    def stack(name, transpose=False):
        return jnp.stack([l[name].T if transpose else l[name] for l in layers])

    wqkv = stack("wqkv", transpose=True)                  # (L, D, 3D), cols = [Q | K | V]
    bqkv = stack("bqkv")                                  # (L, 1, 3D)
    wqkv = wqkv.at[:, :, :D].multiply(scale)              # fold attention scale into Q
    bqkv = bqkv.at[:, :, :D].multiply(scale)

    Vpad = max(128, ((V + 127) // 128) * 128)
    out_w = jnp.zeros((D, Vpad), jnp.float32).at[:, :V].set(params["out_w"].T)
    out_b = jnp.zeros((1, Vpad), jnp.float32).at[:, :V].set(params["out_b"][0])

    return {
        "emb": params["emb"],
        "pos": params["pos"],
        "voc_size": voc_size,
        "wqkv": wqkv.astype(jnp.bfloat16),                # (L, D, 3D)
        "bqkv": bqkv,                                     # (L, 1, 3D) f32
        "wo":   stack("wo", transpose=True).astype(jnp.bfloat16),   # (L, D, D)
        "bo":   stack("bo"),
        "w1":   stack("w1", transpose=True).astype(jnp.bfloat16),   # (L, D, dff)
        "b1":   stack("b1"),
        "w2":   stack("w2", transpose=True).astype(jnp.bfloat16),   # (L, dff, D)
        "b2":   stack("b2"),
        "g1": stack("g1"), "be1": stack("be1"),
        "g2": stack("g2"), "be2": stack("be2"),
        "out_w": out_w.astype(jnp.bfloat16),              # (D, Vpad)
        "out_b": out_b,                                   # (1, Vpad) f32
    }


def _num_batch_groups(B, S, max_rows_per_group=256):
    """Split the batch so v7x's two TensorCores both get work ('parallel' grid axis)
    while keeping each group's activation slab small."""
    for n in range(2, B + 1):
        if B % n == 0 and (B // n) * S <= max_rows_per_group:
            return n
    return 1


def neural_lm_forward(prepared, indices, *, nhead):
    """indices: int32 [B, S] token ids -> log P(next char | context) of shape [B, voc_size]."""
    B, S = indices.shape
    emb, pos = prepared["emb"], prepared["pos"]
    assert S <= pos.shape[0], "sequence length exceeds PositionalEncoding table"

    # JAX glue: embedding lookup + learned positional encoding (gathers stay outside).
    x = (emb[indices] + pos[:S][None, :, :]).astype(jnp.float32)         # (B, S, D)
    D = x.shape[-1]
    assert D % nhead == 0

    num_layers = prepared["wqkv"].shape[0]
    dff = prepared["w1"].shape[-1]
    voc_size = prepared["voc_size"]
    Vpad = prepared["out_w"].shape[1]

    n_groups = _num_batch_groups(B, S)
    Bg = B // n_groups
    # NOTE: best MXU / vreg utilisation needs Bg*S a multiple of 8 and D, dff multiples
    # of 128; at the demo config (D=32, dff=64) the kernel is overhead-bound by design.

    def layer_spec(*shape):
        # one layer's slice of a (L, ...) weight stack, streamed per layer grid step
        return pl.BlockSpec((1,) + shape, lambda b, l: (l, 0, 0))

    kernel = functools.partial(fused_lm_layer_kernel, nhead=nhead, voc_size=voc_size)

    out = pl.pallas_call(
        kernel,
        out_shape=jax.ShapeDtypeStruct((n_groups, Bg, Vpad), jnp.float32),
        grid_spec=pltpu.PrefetchScalarGridSpec(
            num_scalar_prefetch=0,
            grid=(n_groups, num_layers),
            in_specs=[
                pl.BlockSpec((Bg, S, D), lambda b, l: (b, 0, 0)),        # x (resident per b)
                layer_spec(D, 3 * D),                                     # wqkv
                layer_spec(1, 3 * D),                                     # bqkv
                layer_spec(D, D),                                         # wo
                layer_spec(1, D),                                         # bo
                layer_spec(D, dff),                                       # w1
                layer_spec(1, dff),                                       # b1
                layer_spec(dff, D),                                       # w2
                layer_spec(1, D),                                         # b2
                layer_spec(1, D),                                         # g1
                layer_spec(1, D),                                         # be1
                layer_spec(1, D),                                         # g2
                layer_spec(1, D),                                         # be2
                pl.BlockSpec((D, Vpad), lambda b, l: (0, 0)),             # out_w (resident)
                pl.BlockSpec((1, Vpad), lambda b, l: (0, 0)),             # out_b (resident)
            ],
            out_specs=pl.BlockSpec((1, Bg, Vpad), lambda b, l: (b, 0, 0)),
            scratch_shapes=[
                pltpu.VMEM((Bg * S, D), jnp.float32),   # residual-stream slab (persists over l)
                pltpu.VMEM((Bg * S, D), jnp.float32),   # per-head context buffer (no concat)
            ]),
        compiler_params=pltpu.CompilerParams(
            dimension_semantics=("parallel", "arbitrary"),   # batch groups feed both v7x cores
            vmem_limit_bytes=32 * 1024 * 1024),
    )(x,
      prepared["wqkv"], prepared["bqkv"], prepared["wo"], prepared["bo"],
      prepared["w1"], prepared["b1"], prepared["w2"], prepared["b2"],
      prepared["g1"], prepared["be1"], prepared["g2"], prepared["be2"],
      prepared["out_w"], prepared["out_b"])

    return out.reshape(B, Vpad)[:, :voc_size]


# ---------------------------------------------------------------------------
# Pure-JAX f32 reference (mirrors torch TransformerEncoder, post-LN, relu, eps=1e-5)
# ---------------------------------------------------------------------------
def reference_forward(params, indices, *, nhead):
    emb, pos = params["emb"], params["pos"]
    B, S = indices.shape
    x = emb[indices] + pos[:S][None]
    D = x.shape[-1]
    Dh = D // nhead
    mask = jnp.where(jnp.triu(jnp.ones((S, S), jnp.float32), 1) > 0, -jnp.inf, 0.0)

    def ln(v, g, b, eps=1e-5):
        m = v.mean(-1, keepdims=True)
        var = ((v - m) ** 2).mean(-1, keepdims=True)
        return (v - m) / jnp.sqrt(var + eps) * g + b

    for lyr in params["layers"]:
        qkv = x @ lyr["wqkv"].T + lyr["bqkv"]
        q, k, v = qkv[..., :D], qkv[..., D:2 * D], qkv[..., 2 * D:]
        q = q.reshape(B, S, nhead, Dh).transpose(0, 2, 1, 3)
        k = k.reshape(B, S, nhead, Dh).transpose(0, 2, 1, 3)
        v = v.reshape(B, S, nhead, Dh).transpose(0, 2, 1, 3)
        s = (q @ jnp.swapaxes(k, -1, -2)) / jnp.sqrt(float(Dh)) + mask
        p = jax.nn.softmax(s, axis=-1)
        ctx = (p @ v).transpose(0, 2, 1, 3).reshape(B, S, D)
        attn = ctx @ lyr["wo"].T + lyr["bo"]
        x1 = ln(x + attn, lyr["g1"], lyr["be1"])
        hid = jax.nn.relu(x1 @ lyr["w1"].T + lyr["b1"])
        ff = hid @ lyr["w2"].T + lyr["b2"]
        x = ln(x1 + ff, lyr["g2"], lyr["be2"])

    logits = x[:, -1, :] @ params["out_w"].T + params["out_b"]
    return jax.nn.log_softmax(logits, axis=-1)


# ---------------------------------------------------------------------------
# Deterministic parameter initialization (shapes from NeuralLanguageModel.__init__,
# PyTorch (out_features, in_features) convention; prepare_params re-lays them out)
# ---------------------------------------------------------------------------
def init_params(key, voc_size, d_model, nhead, dim_feedforward, num_layers):
    keys = iter(jax.random.split(key, 8 + 4 * num_layers))

    def nrm(shape, scale=0.02):
        return (scale * jax.random.normal(next(keys), shape)).astype(jnp.float32)

    params = {
        "emb": nrm((voc_size, d_model)),              # nn.Embedding(voc_size, d_model)
        "pos": nrm((d_model, d_model)),               # PositionalEncoding(d_model, d_model)
        "out_w": nrm((voc_size, d_model)),            # nn.Linear(d_model, voc_size)
        "out_b": jnp.zeros((1, voc_size), jnp.float32),
        "layers": [],
    }
    for _ in range(num_layers):
        params["layers"].append({
            "wqkv": nrm((3 * d_model, d_model)),
            "bqkv": jnp.zeros((1, 3 * d_model), jnp.float32),
            "wo": nrm((d_model, d_model)),
            "bo": jnp.zeros((1, d_model), jnp.float32),
            "w1": nrm((dim_feedforward, d_model)),
            "b1": jnp.zeros((1, dim_feedforward), jnp.float32),
            "w2": nrm((d_model, dim_feedforward)),
            "b2": jnp.zeros((1, d_model), jnp.float32),
            "g1": jnp.ones((1, d_model), jnp.float32),
            "be1": jnp.zeros((1, d_model), jnp.float32),
            "g2": jnp.ones((1, d_model), jnp.float32),
            "be2": jnp.zeros((1, d_model), jnp.float32),
        })
    return params


# ---------------------------------------------------------------------------
if __name__ == "__main__":
    voc_size = 27        # e.g. lowercase letters + space
    d_model = 32
    nhead = 2
    dim_feedforward = 64
    num_layers = 2
    B, S = 2, 8          # S <= num_positions (= d_model) as in PositionalEncoding

    root = jax.random.PRNGKey(0)
    k_params, k_idx = jax.random.split(root)
    params = init_params(k_params, voc_size, d_model, nhead, dim_feedforward, num_layers)
    prepared = prepare_params(params, voc_size, nhead)

    # "indices" correspond to vocab_index.index_of(c) over a context string.
    indices = jax.random.randint(k_idx, (B, S), 0, voc_size, dtype=jnp.int32)

    log_probs = neural_lm_forward(prepared, indices, nhead=nhead)
    log_probs = jax.block_until_ready(log_probs)

    assert log_probs.shape == (B, voc_size)
    assert bool(jnp.all(jnp.isfinite(log_probs)))
    # rows of log_softmax must sum to 1 in probability space
    assert bool(jnp.all(jnp.abs(jnp.sum(jnp.exp(log_probs), axis=-1) - 1.0) < 1e-4))

    # loose-tolerance check vs. the pure f32 reference (bf16 weights / approx-rcp softmax)
    ref = reference_forward(params, indices, nhead=nhead)
    max_err = float(jnp.max(jnp.abs(log_probs - ref)))
    assert max_err < 5e-2, f"max |log_prob - ref| = {max_err}"

    print("KERNEL_OK")
</pallas_src>

<mosaic_0001>
module attributes {stable_mosaic.version = 11 : i64} {
  func.func @fused_lm_layer_kernel(%arg0: i32, %arg1: i32, %arg2: memref<1x8x32xf32, #tpu.memory_space<vmem>>, %arg3: memref<1x32x96xbf16, #tpu.memory_space<vmem>>, %arg4: memref<1x1x96xf32, #tpu.memory_space<vmem>>, %arg5: memref<1x32x32xbf16, #tpu.memory_space<vmem>>, %arg6: memref<1x1x32xf32, #tpu.memory_space<vmem>>, %arg7: memref<1x32x64xbf16, #tpu.memory_space<vmem>>, %arg8: memref<1x1x64xf32, #tpu.memory_space<vmem>>, %arg9: memref<1x64x32xbf16, #tpu.memory_space<vmem>>, %arg10: memref<1x1x32xf32, #tpu.memory_space<vmem>>, %arg11: memref<1x1x32xf32, #tpu.memory_space<vmem>>, %arg12: memref<1x1x32xf32, #tpu.memory_space<vmem>>, %arg13: memref<1x1x32xf32, #tpu.memory_space<vmem>>, %arg14: memref<1x1x32xf32, #tpu.memory_space<vmem>>, %arg15: memref<32x128xbf16, #tpu.memory_space<vmem>>, %arg16: memref<1x128xf32, #tpu.memory_space<vmem>>, %arg17: memref<1x1x128xf32, #tpu.memory_space<vmem>>, %arg18: memref<8x32xf32, #tpu.memory_space<vmem>>, %arg19: memref<8x32xf32, #tpu.memory_space<vmem>>) attributes {dimension_semantics = [#tpu.dimension_semantics<parallel>, #tpu.dimension_semantics<arbitrary>], iteration_bounds = array<i64: 2, 2>, scalar_prefetch = 0 : i64, scratch_operands = 2 : i64, tpu.core_type = #tpu.core_type<tc>, window_params = [{transform_indices = @transform_0, window_bounds = array<i64: 1, 8, 32>}, {transform_indices = @transform_1, window_bounds = array<i64: 1, 32, 96>}, {transform_indices = @transform_2, window_bounds = array<i64: 1, 1, 96>}, {transform_indices = @transform_3, window_bounds = array<i64: 1, 32, 32>}, {transform_indices = @transform_4, window_bounds = array<i64: 1, 1, 32>}, {transform_indices = @transform_5, window_bounds = array<i64: 1, 32, 64>}, {transform_indices = @transform_6, window_bounds = array<i64: 1, 1, 64>}, {transform_indices = @transform_7, window_bounds = array<i64: 1, 64, 32>}, {transform_indices = @transform_8, window_bounds = array<i64: 1, 1, 32>}, {transform_indices = @transform_9, window_bounds = array<i64: 1, 1, 32>}, {transform_indices = @transform_10, window_bounds = array<i64: 1, 1, 32>}, {transform_indices = @transform_11, window_bounds = array<i64: 1, 1, 32>}, {transform_indices = @transform_12, window_bounds = array<i64: 1, 1, 32>}, {pipeline_mode = #tpu.pipeline_mode<synchronous>, transform_indices = @transform_13, window_bounds = array<i64: 32, 128>}, {pipeline_mode = #tpu.pipeline_mode<synchronous>, transform_indices = @transform_14, window_bounds = array<i64: 1, 128>}, {transform_indices = @transform_15, window_bounds = array<i64: 1, 1, 128>}]} {
    %c0_i32 = arith.constant 0 : i32
    %0 = arith.cmpi eq, %arg1, %c0_i32 : i32
    %1 = arith.extui %0 : i1 to i32
    %c0_i32_0 = arith.constant 0 : i32
    %2 = arith.cmpi ne, %1, %c0_i32_0 : i32
    scf.if %2 {
      %c0_70 = arith.constant 0 : index
      %c0_71 = arith.constant 0 : index
      %c0_72 = arith.constant 0 : index
      %149 = vector.load %arg2[%c0_70, %c0_71, %c0_72] : memref<1x8x32xf32, #tpu.memory_space<vmem>>, vector<1x8x32xf32>
      %150 = vector.shape_cast %149 : vector<1x8x32xf32> to vector<8x32xf32>
      %c0_73 = arith.constant 0 : index
      %c0_74 = arith.constant 0 : index
      %151 = vector.load %arg18[%c0_73, %c0_74] : memref<8x32xf32, #tpu.memory_space<vmem>>, vector<8x32xf32>
      tpu.vector_store %arg18[%c0_73, %c0_74], %150 {strides = array<i32>} : memref<8x32xf32, #tpu.memory_space<vmem>>, vector<8x32xf32>,
    } else {
    }
    %3 = tpu.iota {dimensions = array<i32: 0>} : vector<8x8xi32>
    %4 = tpu.iota {dimensions = array<i32: 1>} : vector<8x8xi32>
    %5 = arith.cmpi sgt, %4, %3 : vector<8x8xi32>
    %cst = arith.constant 0xFF800000 : f32
    %cst_1 = arith.constant 0.000000e+00 : f32
    %6 = vector.broadcast %cst : f32 to vector<8x8xf32>
    %7 = vector.broadcast %cst_1 : f32 to vector<8x8xf32>
    %8 = arith.select %5, %6, %7 : vector<8x8xi1>, vector<8x8xf32>
    %9 = vector.shape_cast %8 : vector<8x8xf32> to vector<1x8x8xf32>
    %c0 = arith.constant 0 : index
    %c0_2 = arith.constant 0 : index
    %10 = vector.load %arg18[%c0, %c0_2] : memref<8x32xf32, #tpu.memory_space<vmem>>, vector<8x32xf32>
    %11 = arith.truncf %10 : vector<8x32xf32> to vector<8x32xbf16>
    %c0_3 = arith.constant 0 : index
    %c0_4 = arith.constant 0 : index
    %c0_5 = arith.constant 0 : index
    %12 = vector.load %arg3[%c0_3, %c0_4, %c0_5] : memref<1x32x96xbf16, #tpu.memory_space<vmem>>, vector<1x32x96xbf16>
    %13 = vector.shape_cast %12 : vector<1x32x96xbf16> to vector<32x96xbf16>
    %cst_6 = arith.constant dense<0.000000e+00> : vector<8x96xf32>
    %14 = tpu.matmul %11, %13, %cst_6 {dimension_numbers = #tpu.dot_dimension_numbers<[1], [0], [0], [1], [0, 0, 1, 1], [], []>} : vector<8x32xbf16>, vector<32x96xbf16>, vector<8x96xf32> -> vector<8x96xf32>
    %c0_7 = arith.constant 0 : index
    %c0_8 = arith.constant 0 : index
    %c0_9 = arith.constant 0 : index
    %15 = vector.load %arg4[%c0_7, %c0_8, %c0_9] : memref<1x1x96xf32, #tpu.memory_space<vmem>>, vector<1x1x96xf32>
    %16 = vector.shape_cast %15 : vector<1x1x96xf32> to vector<1x96xf32>
    %17 = vector.broadcast %16 : vector<1x96xf32> to vector<8x96xf32>
    %18 = arith.addf %14, %17 : vector<8x96xf32>
    %19 = arith.truncf %18 : vector<8x96xf32> to vector<8x96xbf16>
    %20 = vector.extract_strided_slice %19 {offsets = [0, 0], sizes = [8, 16], strides = [1, 1]} : vector<8x96xbf16> to vector<8x16xbf16>
    %21 = vector.shape_cast %20 : vector<8x16xbf16> to vector<1x8x16xbf16>
    %22 = vector.extract_strided_slice %19 {offsets = [0, 32], sizes = [8, 16], strides = [1, 1]} : vector<8x96xbf16> to vector<8x16xbf16>
    %23 = vector.shape_cast %22 : vector<8x16xbf16> to vector<1x8x16xbf16>
    %24 = vector.extract_strided_slice %19 {offsets = [0, 64], sizes = [8, 16], strides = [1, 1]} : vector<8x96xbf16> to vector<8x16xbf16>
    %25 = vector.shape_cast %24 : vector<8x16xbf16> to vector<1x8x16xbf16>
    "tpu.trace_start"() <{level = 10 : i32, message = "bqd,bkd->bqk"}> : () -> ()
    %cst_10 = arith.constant dense<0.000000e+00> : vector<1x8x8xf32>
    %26 = tpu.matmul %21, %23, %cst_10 {dimension_numbers = #tpu.dot_dimension_numbers<[2], [2], [1], [1], [0, 0, 0, 1, 1, 1], [0], [0]>} : vector<1x8x16xbf16>, vector<1x8x16xbf16>, vector<1x8x8xf32> -> vector<1x8x8xf32>
    "tpu.trace_stop"() : () -> ()
    %27 = arith.addf %26, %9 : vector<1x8x8xf32>
    %cst_11 = arith.constant dense<0xFF800000> : vector<1x8xf32>
    %28 = vector.multi_reduction <maximumf>, %27, %cst_11 [2] : vector<1x8x8xf32> to vector<1x8xf32>
    %29 = vector.shape_cast %28 : vector<1x8xf32> to vector<1x8x1xf32>
    %30 = vector.broadcast %29 : vector<1x8x1xf32> to vector<1x8x8xf32>
    %31 = arith.subf %27, %30 : vector<1x8x8xf32>
    %32 = math.exp %31 : vector<1x8x8xf32>
    %cst_12 = arith.constant dense<0.000000e+00> : vector<1x8xf32>
    %33 = vector.multi_reduction <add>, %32, %cst_12 [2] : vector<1x8x8xf32> to vector<1x8xf32>
    %34 = vector.shape_cast %33 : vector<1x8xf32> to vector<1x8x1xf32>
    %35 = tpu.reciprocal %34 {approx = true} : vector<1x8x1xf32> -> vector<1x8x1xf32>
    %36 = vector.broadcast %35 : vector<1x8x1xf32> to vector<1x8x8xf32>
    %37 = arith.mulf %32, %36 : vector<1x8x8xf32>
    %38 = arith.truncf %37 : vector<1x8x8xf32> to vector<1x8x8xbf16>
    "tpu.trace_start"() <{level = 10 : i32, message = "bqk,bkd->bqd"}> : () -> ()
    %cst_13 = arith.constant dense<0.000000e+00> : vector<1x8x16xf32>
    %39 = tpu.matmul %38, %25, %cst_13 {dimension_numbers = #tpu.dot_dimension_numbers<[2], [1], [1], [2], [0, 0, 0, 1, 1, 2], [0], [0]>} : vector<1x8x8xbf16>, vector<1x8x16xbf16>, vector<1x8x16xf32> -> vector<1x8x16xf32>
    "tpu.trace_stop"() : () -> ()
    %40 = vector.shape_cast %39 : vector<1x8x16xf32> to vector<8x16xf32>
    %c0_14 = arith.constant 0 : index
    %c0_15 = arith.constant 0 : index
    %41 = vector.load %arg19[%c0_14, %c0_15] : memref<8x32xf32, #tpu.memory_space<vmem>>, vector<8x16xf32>
    tpu.vector_store %arg19[%c0_14, %c0_15], %40 {strides = array<i32>} : memref<8x32xf32, #tpu.memory_space<vmem>>, vector<8x16xf32>,
    %42 = vector.extract_strided_slice %19 {offsets = [0, 16], sizes = [8, 16], strides = [1, 1]} : vector<8x96xbf16> to vector<8x16xbf16>
    %43 = vector.shape_cast %42 : vector<8x16xbf16> to vector<1x8x16xbf16>
    %44 = vector.extract_strided_slice %19 {offsets = [0, 48], sizes = [8, 16], strides = [1, 1]} : vector<8x96xbf16> to vector<8x16xbf16>
    %45 = vector.shape_cast %44 : vector<8x16xbf16> to vector<1x8x16xbf16>
    %46 = vector.extract_strided_slice %19 {offsets = [0, 80], sizes = [8, 16], strides = [1, 1]} : vector<8x96xbf16> to vector<8x16xbf16>
    %47 = vector.shape_cast %46 : vector<8x16xbf16> to vector<1x8x16xbf16>
    "tpu.trace_start"() <{level = 10 : i32, message = "bqd,bkd->bqk"}> : () -> ()
    %cst_16 = arith.constant dense<0.000000e+00> : vector<1x8x8xf32>
    %48 = tpu.matmul %43, %45, %cst_16 {dimension_numbers = #tpu.dot_dimension_numbers<[2], [2], [1], [1], [0, 0, 0, 1, 1, 1], [0], [0]>} : vector<1x8x16xbf16>, vector<1x8x16xbf16>, vector<1x8x8xf32> -> vector<1x8x8xf32>
    "tpu.trace_stop"() : () -> ()
    %49 = arith.addf %48, %9 : vector<1x8x8xf32>
    %cst_17 = arith.constant dense<0xFF800000> : vector<1x8xf32>
    %50 = vector.multi_reduction <maximumf>, %49, %cst_17 [2] : vector<1x8x8xf32> to vector<1x8xf32>
    %51 = vector.shape_cast %50 : vector<1x8xf32> to vector<1x8x1xf32>
    %52 = vector.broadcast %51 : vector<1x8x1xf32> to vector<1x8x8xf32>
    %53 = arith.subf %49, %52 : vector<1x8x8xf32>
    %54 = math.exp %53 : vector<1x8x8xf32>
    %cst_18 = arith.constant dense<0.000000e+00> : vector<1x8xf32>
    %55 = vector.multi_reduction <add>, %54, %cst_18 [2] : vector<1x8x8xf32> to vector<1x8xf32>
    %56 = vector.shape_cast %55 : vector<1x8xf32> to vector<1x8x1xf32>
    %57 = tpu.reciprocal %56 {approx = true} : vector<1x8x1xf32> -> vector<1x8x1xf32>
    %58 = vector.broadcast %57 : vector<1x8x1xf32> to vector<1x8x8xf32>
    %59 = arith.mulf %54, %58 : vector<1x8x8xf32>
    %60 = arith.truncf %59 : vector<1x8x8xf32> to vector<1x8x8xbf16>
    "tpu.trace_start"() <{level = 10 : i32, message = "bqk,bkd->bqd"}> : () -> ()
    %cst_19 = arith.constant dense<0.000000e+00> : vector<1x8x16xf32>
    %61 = tpu.matmul %60, %47, %cst_19 {dimension_numbers = #tpu.dot_dimension_numbers<[2], [1], [1], [2], [0, 0, 0, 1, 1, 2], [0], [0]>} : vector<1x8x8xbf16>, vector<1x8x16xbf16>, vector<1x8x16xf32> -> vector<1x8x16xf32>
    "tpu.trace_stop"() : () -> ()
    %62 = vector.shape_cast %61 : vector<1x8x16xf32> to vector<8x16xf32>
    %c0_20 = arith.constant 0 : index
    %c16 = arith.constant 16 : index
    %63 = vector.load %arg19[%c0_20, %c16] : memref<8x32xf32, #tpu.memory_space<vmem>>, vector<8x16xf32>
    tpu.vector_store %arg19[%c0_20, %c16], %62 {strides = array<i32>} : memref<8x32xf32, #tpu.memory_space<vmem>>, vector<8x16xf32>,
    %c0_21 = arith.constant 0 : index
    %c0_22 = arith.constant 0 : index
    %64 = vector.load %arg19[%c0_21, %c0_22] : memref<8x32xf32, #tpu.memory_space<vmem>>, vector<8x32xf32>
    %65 = arith.truncf %64 : vector<8x32xf32> to vector<8x32xbf16>
    %c0_23 = arith.constant 0 : index
    %c0_24 = arith.constant 0 : index
    %c0_25 = arith.constant 0 : index
    %66 = vector.load %arg5[%c0_23, %c0_24, %c0_25] : memref<1x32x32xbf16, #tpu.memory_space<vmem>>, vector<1x32x32xbf16>
    %67 = vector.shape_cast %66 : vector<1x32x32xbf16> to vector<32x32xbf16>
    %cst_26 = arith.constant dense<0.000000e+00> : vector<8x32xf32>
    %68 = tpu.matmul %65, %67, %cst_26 {dimension_numbers = #tpu.dot_dimension_numbers<[1], [0], [0], [1], [0, 0, 1, 1], [], []>} : vector<8x32xbf16>, vector<32x32xbf16>, vector<8x32xf32> -> vector<8x32xf32>
    %c0_27 = arith.constant 0 : index
    %c0_28 = arith.constant 0 : index
    %c0_29 = arith.constant 0 : index
    %69 = vector.load %arg6[%c0_27, %c0_28, %c0_29] : memref<1x1x32xf32, #tpu.memory_space<vmem>>, vector<1x1x32xf32>
    %70 = vector.shape_cast %69 : vector<1x1x32xf32> to vector<1x32xf32>
    %71 = vector.broadcast %70 : vector<1x32xf32> to vector<8x32xf32>
    %72 = arith.addf %68, %71 : vector<8x32xf32>
    %73 = arith.addf %10, %72 : vector<8x32xf32>
    %c0_30 = arith.constant 0 : index
    %c0_31 = arith.constant 0 : index
    %c0_32 = arith.constant 0 : index
    %74 = vector.load %arg11[%c0_30, %c0_31, %c0_32] : memref<1x1x32xf32, #tpu.memory_space<vmem>>, vector<1x1x32xf32>
    %75 = vector.shape_cast %74 : vector<1x1x32xf32> to vector<1x32xf32>
    %c0_33 = arith.constant 0 : index
    %c0_34 = arith.constant 0 : index
    %c0_35 = arith.constant 0 : index
    %76 = vector.load %arg12[%c0_33, %c0_34, %c0_35] : memref<1x1x32xf32, #tpu.memory_space<vmem>>, vector<1x1x32xf32>
    %77 = vector.shape_cast %76 : vector<1x1x32xf32> to vector<1x32xf32>
    %cst_36 = arith.constant dense<0.000000e+00> : vector<8xf32>
    %78 = vector.multi_reduction <add>, %73, %cst_36 [1] : vector<8x32xf32> to vector<8xf32>
    %79 = vector.shape_cast %78 : vector<8xf32> to vector<8x1xf32>
    %cst_37 = arith.constant 3.200000e+01 : f32
    %80 = vector.broadcast %cst_37 : f32 to vector<8x1xf32>
    %81 = arith.divf %79, %80 : vector<8x1xf32>
    %82 = vector.broadcast %81 : vector<8x1xf32> to vector<8x32xf32>
    %83 = arith.subf %73, %82 : vector<8x32xf32>
    %84 = arith.mulf %83, %83 : vector<8x32xf32>
    %cst_38 = arith.constant dense<0.000000e+00> : vector<8xf32>
    %85 = vector.multi_reduction <add>, %84, %cst_38 [1] : vector<8x32xf32> to vector<8xf32>
    %86 = vector.shape_cast %85 : vector<8xf32> to vector<8x1xf32>
    %cst_39 = arith.constant 3.200000e+01 : f32
    %87 = vector.broadcast %cst_39 : f32 to vector<8x1xf32>
    %88 = arith.divf %86, %87 : vector<8x1xf32>
    %89 = vector.broadcast %81 : vector<8x1xf32> to vector<8x32xf32>
    %90 = arith.subf %73, %89 : vector<8x32xf32>
    %cst_40 = arith.constant 9.99999974E-6 : f32
    %91 = vector.broadcast %cst_40 : f32 to vector<8x1xf32>
    %92 = arith.addf %88, %91 : vector<8x1xf32>
    %93 = math.rsqrt %92 : vector<8x1xf32>
    %94 = vector.broadcast %93 : vector<8x1xf32> to vector<8x32xf32>
    %95 = arith.mulf %90, %94 : vector<8x32xf32>
    %96 = vector.broadcast %75 : vector<1x32xf32> to vector<8x32xf32>
    %97 = arith.mulf %95, %96 : vector<8x32xf32>
    %98 = vector.broadcast %77 : vector<1x32xf32> to vector<8x32xf32>
    %99 = arith.addf %97, %98 : vector<8x32xf32>
    %100 = arith.truncf %99 : vector<8x32xf32> to vector<8x32xbf16>
    %c0_41 = arith.constant 0 : index
    %c0_42 = arith.constant 0 : index
    %c0_43 = arith.constant 0 : index
    %101 = vector.load %arg7[%c0_41, %c0_42, %c0_43] : memref<1x32x64xbf16, #tpu.memory_space<vmem>>, vector<1x32x64xbf16>
    %102 = vector.shape_cast %101 : vector<1x32x64xbf16> to vector<32x64xbf16>
    %cst_44 = arith.constant dense<0.000000e+00> : vector<8x64xf32>
    %103 = tpu.matmul %100, %102, %cst_44 {dimension_numbers = #tpu.dot_dimension_numbers<[1], [0], [0], [1], [0, 0, 1, 1], [], []>} : vector<8x32xbf16>, vector<32x64xbf16>, vector<8x64xf32> -> vector<8x64xf32>
    %c0_45 = arith.constant 0 : index
    %c0_46 = arith.constant 0 : index
    %c0_47 = arith.constant 0 : index
    %104 = vector.load %arg8[%c0_45, %c0_46, %c0_47] : memref<1x1x64xf32, #tpu.memory_space<vmem>>, vector<1x1x64xf32>
    %105 = vector.shape_cast %104 : vector<1x1x64xf32> to vector<1x64xf32>
    %106 = vector.broadcast %105 : vector<1x64xf32> to vector<8x64xf32>
    %107 = arith.addf %103, %106 : vector<8x64xf32>
    %cst_48 = arith.constant 0.000000e+00 : f32
    %108 = vector.broadcast %cst_48 : f32 to vector<8x64xf32>
    %109 = arith.maximumf %107, %108 : vector<8x64xf32>
    %110 = arith.truncf %109 : vector<8x64xf32> to vector<8x64xbf16>
    %c0_49 = arith.constant 0 : index
    %c0_50 = arith.constant 0 : index
    %c0_51 = arith.constant 0 : index
    %111 = vector.load %arg9[%c0_49, %c0_50, %c0_51] : memref<1x64x32xbf16, #tpu.memory_space<vmem>>, vector<1x64x32xbf16>
    %112 = vector.shape_cast %111 : vector<1x64x32xbf16> to vector<64x32xbf16>
    %cst_52 = arith.constant dense<0.000000e+00> : vector<8x32xf32>
    %113 = tpu.matmul %110, %112, %cst_52 {dimension_numbers = #tpu.dot_dimension_numbers<[1], [0], [0], [1], [0, 0, 1, 1], [], []>} : vector<8x64xbf16>, vector<64x32xbf16>, vector<8x32xf32> -> vector<8x32xf32>
    %c0_53 = arith.constant 0 : index
    %c0_54 = arith.constant 0 : index
    %c0_55 = arith.constant 0 : index
    %114 = vector.load %arg10[%c0_53, %c0_54, %c0_55] : memref<1x1x32xf32, #tpu.memory_space<vmem>>, vector<1x1x32xf32>
    %115 = vector.shape_cast %114 : vector<1x1x32xf32> to vector<1x32xf32>
    %116 = vector.broadcast %115 : vector<1x32xf32> to vector<8x32xf32>
    %117 = arith.addf %113, %116 : vector<8x32xf32>
    %118 = arith.addf %99, %117 : vector<8x32xf32>
    %c0_56 = arith.constant 0 : index
    %c0_57 = arith.constant 0 : index
    %c0_58 = arith.constant 0 : index
    %119 = vector.load %arg13[%c0_56, %c0_57, %c0_58] : memref<1x1x32xf32, #tpu.memory_space<vmem>>, vector<1x1x32xf32>
    %120 = vector.shape_cast %119 : vector<1x1x32xf32> to vector<1x32xf32>
    %c0_59 = arith.constant 0 : index
    %c0_60 = arith.constant 0 : index
    %c0_61 = arith.constant 0 : index
    %121 = vector.load %arg14[%c0_59, %c0_60, %c0_61] : memref<1x1x32xf32, #tpu.memory_space<vmem>>, vector<1x1x32xf32>
    %122 = vector.shape_cast %121 : vector<1x1x32xf32> to vector<1x32xf32>
    %cst_62 = arith.constant dense<0.000000e+00> : vector<8xf32>
    %123 = vector.multi_reduction <add>, %118, %cst_62 [1] : vector<8x32xf32> to vector<8xf32>
    %124 = vector.shape_cast %123 : vector<8xf32> to vector<8x1xf32>
    %cst_63 = arith.constant 3.200000e+01 : f32
    %125 = vector.broadcast %cst_63 : f32 to vector<8x1xf32>
    %126 = arith.divf %124, %125 : vector<8x1xf32>
    %127 = vector.broadcast %126 : vector<8x1xf32> to vector<8x32xf32>
    %128 = arith.subf %118, %127 : vector<8x32xf32>
    %129 = arith.mulf %128, %128 : vector<8x32xf32>
    %cst_64 = arith.constant dense<0.000000e+00> : vector<8xf32>
    %130 = vector.multi_reduction <add>, %129, %cst_64 [1] : vector<8x32xf32> to vector<8xf32>
    %131 = vector.shape_cast %130 : vector<8xf32> to vector<8x1xf32>
    %cst_65 = arith.constant 3.200000e+01 : f32
    %132 = vector.broadcast %cst_65 : f32 to vector<8x1xf32>
    %133 = arith.divf %131, %132 : vector<8x1xf32>
    %134 = vector.broadcast %126 : vector<8x1xf32> to vector<8x32xf32>
    %135 = arith.subf %118, %134 : vector<8x32xf32>
    %cst_66 = arith.constant 9.99999974E-6 : f32
    %136 = vector.broadcast %cst_66 : f32 to vector<8x1xf32>
    %137 = arith.addf %133, %136 : vector<8x1xf32>
    %138 = math.rsqrt %137 : vector<8x1xf32>
    %139 = vector.broadcast %138 : vector<8x1xf32> to vector<8x32xf32>
    %140 = arith.mulf %135, %139 : vector<8x32xf32>
    %141 = vector.broadcast %120 : vector<1x32xf32> to vector<8x32xf32>
    %142 = arith.mulf %140, %141 : vector<8x32xf32>
    %143 = vector.broadcast %122 : vector<1x32xf32> to vector<8x32xf32>
    %144 = arith.addf %142, %143 : vector<8x32xf32>
    %c0_67 = arith.constant 0 : index
    %c0_68 = arith.constant 0 : index
    %145 = vector.load %arg18[%c0_67, %c0_68] : memref<8x32xf32, #tpu.memory_space<vmem>>, vector<8x32xf32>
    tpu.vector_store %arg18[%c0_67, %c0_68], %144 {strides = array<i32>} : memref<8x32xf32, #tpu.memory_space<vmem>>, vector<8x32xf32>,
    %c1_i32 = arith.constant 1 : i32
    %146 = arith.cmpi eq, %arg1, %c1_i32 : i32
    %147 = arith.extui %146 : i1 to i32
    %c0_i32_69 = arith.constant 0 : i32
    %148 = arith.cmpi ne, %147, %c0_i32_69 : i32
    scf.if %148 {
      %149 = vector.shape_cast %144 : vector<8x32xf32> to vector<1x8x32xf32>
      %150 = vector.extract_strided_slice %149 {offsets = [0, 7, 0], sizes = [1, 1, 32], strides = [1, 1, 1]} : vector<1x8x32xf32> to vector<1x1x32xf32>
      %151 = vector.shape_cast %150 : vector<1x1x32xf32> to vector<1x32xf32>
      %152 = arith.truncf %151 : vector<1x32xf32> to vector<1x32xbf16>
      %c0_70 = arith.constant 0 : index
      %c0_71 = arith.constant 0 : index
      %153 = vector.load %arg15[%c0_70, %c0_71] : memref<32x128xbf16, #tpu.memory_space<vmem>>, vector<32x128xbf16>
      %cst_72 = arith.constant dense<0.000000e+00> : vector<1x128xf32>
      %154 = tpu.matmul %152, %153, %cst_72 {dimension_numbers = #tpu.dot_dimension_numbers<[1], [0], [0], [1], [0, 0, 1, 1], [], []>} : vector<1x32xbf16>, vector<32x128xbf16>, vector<1x128xf32> -> vector<1x128xf32>
      %c0_73 = arith.constant 0 : index
      %c0_74 = arith.constant 0 : index
      %155 = vector.load %arg16[%c0_73, %c0_74] : memref<1x128xf32, #tpu.memory_space<vmem>>, vector<1x128xf32>
      %156 = arith.addf %154, %155 : vector<1x128xf32>
      %157 = tpu.iota {dimensions = array<i32: 1>} : vector<1x128xi32>
      %c27_i32 = arith.constant 27 : i32
      %158 = vector.broadcast %c27_i32 : i32 to vector<1x128xi32>
      %159 = arith.cmpi slt, %157, %158 : vector<1x128xi32>
      %cst_75 = arith.constant -1.000000e+30 : f32
      %160 = vector.broadcast %cst_75 : f32 to vector<1x128xf32>
      %161 = arith.select %159, %156, %160 : vector<1x128xi1>, vector<1x128xf32>
      %cst_76 = arith.constant dense<0xFF800000> : vector<1xf32>
      %162 = vector.multi_reduction <maximumf>, %161, %cst_76 [1] : vector<1x128xf32> to vector<1xf32>
      %163 = vector.shape_cast %162 : vector<1xf32> to vector<1x1xf32>
      %164 = vector.broadcast %163 : vector<1x1xf32> to vector<1x128xf32>
      %165 = arith.subf %161, %164 : vector<1x128xf32>
      %166 = math.exp %165 : vector<1x128xf32>
      %cst_77 = arith.constant dense<0.000000e+00> : vector<1xf32>
      %167 = vector.multi_reduction <add>, %166, %cst_77 [1] : vector<1x128xf32> to vector<1xf32>
      %168 = vector.shape_cast %167 : vector<1xf32> to vector<1x1xf32>
      %169 = math.log %168 : vector<1x1xf32>
      %170 = vector.broadcast %169 : vector<1x1xf32> to vector<1x128xf32>
      %171 = arith.subf %165, %170 : vector<1x128xf32>
      %c0_78 = arith.constant 0 : index
      %c0_79 = arith.constant 0 : index
      %c0_80 = arith.constant 0 : index
      %172 = vector.load %arg17[%c0_78, %c0_79, %c0_80] : memref<1x1x128xf32, #tpu.memory_space<vmem>>, vector<1x1x128xf32>
      %173 = vector.shape_cast %172 : vector<1x1x128xf32> to vector<1x128xf32>
      %174 = vector.shape_cast %171 : vector<1x128xf32> to vector<1x1x128xf32>
      tpu.vector_store %arg17[%c0_78, %c0_79, %c0_80], %174 {strides = array<i32>} : memref<1x1x128xf32, #tpu.memory_space<vmem>>, vector<1x1x128xf32>,
    } else {
    }
    return
  }
  func.func @transform_0(%arg0: i32, %arg1: i32) -> (i32, i32, i32) {
    %c0_i32 = arith.constant 0 : i32
    %c0_i32_0 = arith.constant 0 : i32
    %c0_i32_1 = arith.constant 0 : i32
    return %arg0, %c0_i32, %c0_i32_0 : i32, i32, i32
  }
  func.func @transform_1(%arg0: i32, %arg1: i32) -> (i32, i32, i32) {
    %c0_i32 = arith.constant 0 : i32
    %c0_i32_0 = arith.constant 0 : i32
    %c0_i32_1 = arith.constant 0 : i32
    return %arg1, %c0_i32, %c0_i32_0 : i32, i32, i32
  }
  func.func @transform_2(%arg0: i32, %arg1: i32) -> (i32, i32, i32) {
    %c0_i32 = arith.constant 0 : i32
    %c0_i32_0 = arith.constant 0 : i32
    %c0_i32_1 = arith.constant 0 : i32
    return %arg1, %c0_i32, %c0_i32_0 : i32, i32, i32
  }
  func.func @transform_3(%arg0: i32, %arg1: i32) -> (i32, i32, i32) {
    %c0_i32 = arith.constant 0 : i32
    %c0_i32_0 = arith.constant 0 : i32
    %c0_i32_1 = arith.constant 0 : i32
    return %arg1, %c0_i32, %c0_i32_0 : i32, i32, i32
  }
  func.func @transform_4(%arg0: i32, %arg1: i32) -> (i32, i32, i32) {
    %c0_i32 = arith.constant 0 : i32
    %c0_i32_0 = arith.constant 0 : i32
    %c0_i32_1 = arith.constant 0 : i32
    return %arg1, %c0_i32, %c0_i32_0 : i32, i32, i32
  }
  func.func @transform_5(%arg0: i32, %arg1: i32) -> (i32, i32, i32) {
    %c0_i32 = arith.constant 0 : i32
    %c0_i32_0 = arith.constant 0 : i32
    %c0_i32_1 = arith.constant 0 : i32
    return %arg1, %c0_i32, %c0_i32_0 : i32, i32, i32
  }
  func.func @transform_6(%arg0: i32, %arg1: i32) -> (i32, i32, i32) {
    %c0_i32 = arith.constant 0 : i32
    %c0_i32_0 = arith.constant 0 : i32
    %c0_i32_1 = arith.constant 0 : i32
    return %arg1, %c0_i32, %c0_i32_0 : i32, i32, i32
  }
  func.func @transform_7(%arg0: i32, %arg1: i32) -> (i32, i32, i32) {
    %c0_i32 = arith.constant 0 : i32
    %c0_i32_0 = arith.constant 0 : i32
    %c0_i32_1 = arith.constant 0 : i32
    return %arg1, %c0_i32, %c0_i32_0 : i32, i32, i32
  }
  func.func @transform_8(%arg0: i32, %arg1: i32) -> (i32, i32, i32) {
    %c0_i32 = arith.constant 0 : i32
    %c0_i32_0 = arith.constant 0 : i32
    %c0_i32_1 = arith.constant 0 : i32
    return %arg1, %c0_i32, %c0_i32_0 : i32, i32, i32
  }
  func.func @transform_9(%arg0: i32, %arg1: i32) -> (i32, i32, i32) {
    %c0_i32 = arith.constant 0 : i32
    %c0_i32_0 = arith.constant 0 : i32
    %c0_i32_1 = arith.constant 0 : i32
    return %arg1, %c0_i32, %c0_i32_0 : i32, i32, i32
  }
  func.func @transform_10(%arg0: i32, %arg1: i32) -> (i32, i32, i32) {
    %c0_i32 = arith.constant 0 : i32
    %c0_i32_0 = arith.constant 0 : i32
    %c0_i32_1 = arith.constant 0 : i32
    return %arg1, %c0_i32, %c0_i32_0 : i32, i32, i32
  }
  func.func @transform_11(%arg0: i32, %arg1: i32) -> (i32, i32, i32) {
    %c0_i32 = arith.constant 0 : i32
    %c0_i32_0 = arith.constant 0 : i32
    %c0_i32_1 = arith.constant 0 : i32
    return %arg1, %c0_i32, %c0_i32_0 : i32, i32, i32
  }
  func.func @transform_12(%arg0: i32, %arg1: i32) -> (i32, i32, i32) {
    %c0_i32 = arith.constant 0 : i32
    %c0_i32_0 = arith.constant 0 : i32
    %c0_i32_1 = arith.constant 0 : i32
    return %arg1, %c0_i32, %c0_i32_0 : i32, i32, i32
  }
  func.func @transform_13(%arg0: i32, %arg1: i32) -> (i32, i32) {
    %c0_i32 = arith.constant 0 : i32
    %c0_i32_0 = arith.constant 0 : i32
    %c0_i32_1 = arith.constant 0 : i32
    return %c0_i32, %c0_i32_0 : i32, i32
  }
  func.func @transform_14(%arg0: i32, %arg1: i32) -> (i32, i32) {
    %c0_i32 = arith.constant 0 : i32
    %c0_i32_0 = arith.constant 0 : i32
    %c0_i32_1 = arith.constant 0 : i32
    return %c0_i32, %c0_i32_0 : i32, i32
  }
  func.func @transform_15(%arg0: i32, %arg1: i32) -> (i32, i32, i32) {
    %c0_i32 = arith.constant 0 : i32
    %c0_i32_0 = arith.constant 0 : i32
    %c0_i32_1 = arith.constant 0 : i32
    return %arg0, %c0_i32, %c0_i32_0 : i32, i32, i32
  }
}

</mosaic_0001>

<llo_original>
// kernel: tpu_custom_call.1
$region0: #{tpu_custom_call.1}
  #allocation0 [shape = 'u32[]', space=smem, size = 0x4, offset = 0x4, fixed_abs, tag = 'smem constant byte address 0x4 - core index']
  #allocation1 [shape = 'u32[72,128]{1,0:T(1,128)}', space=vmem, size = 0x9000, scoped, tag = 'internal scratch']
  #allocation2 [shape = 'f32[8,32]{1,0:T(8,128)}', space=vmem, size = 0x1000, scoped, tag = 'scratch operand']
  #allocation3 [shape = 'f32[8,32]{1,0:T(8,128)}', space=vmem, size = 0x1000, scoped, tag = 'scratch operand']
  %s0 = inlined_call_operand.hbm [shape: f32[2,8,32], index: 0, kind: input, shape index: {}]
  %s1 = inlined_call_operand.vmem [shape: bf16[2,32,96], index: 1, kind: input, shape index: {}]
  %s2 = inlined_call_operand.hbm [shape: f32[2,1,96], index: 2, kind: input, shape index: {}]
  %s3 = inlined_call_operand.vmem [shape: bf16[2,32,32], index: 3, kind: input, shape index: {}]
  %s4 = inlined_call_operand.vmem [shape: f32[2,1,32], index: 4, kind: input, shape index: {}]
  %s5 = inlined_call_operand.vmem [shape: bf16[2,32,64], index: 5, kind: input, shape index: {}]
  %s6 = inlined_call_operand.vmem [shape: f32[2,1,64], index: 6, kind: input, shape index: {}]
  %s7 = inlined_call_operand.vmem [shape: bf16[2,64,32], index: 7, kind: input, shape index: {}]
  %s8 = inlined_call_operand.vmem [shape: f32[2,1,32], index: 8, kind: input, shape index: {}]
  %s9 = inlined_call_operand.hbm [shape: f32[2,1,32], index: 9, kind: input, shape index: {}]
  %s10 = inlined_call_operand.vmem [shape: f32[2,1,32], index: 10, kind: input, shape index: {}]
  %s11 = inlined_call_operand.hbm [shape: f32[2,1,32], index: 11, kind: input, shape index: {}]
  %s12 = inlined_call_operand.vmem [shape: f32[2,1,32], index: 12, kind: input, shape index: {}]
  %s13 = inlined_call_operand.hbm [shape: bf16[32,128], index: 13, kind: input, shape index: {}]
  %s14 = inlined_call_operand.vmem [shape: f32[1,128], index: 14, kind: input, shape index: {}]
  %s15 = inlined_call_operand.hbm [shape: f32[2,1,128], index: 15, kind: output, shape index: {}]
  %s16 = sld [smem:[#allocation0]]
  $region121: #{tpu_custom_call.1} parent=0
    _
  %s18 = ssub.s32 1, %s16
  %s19 = scalar_select 0, %s18, %s16
  $region1: #{tpu_custom_call.1} parent=0
    #allocation4 [shape = 'u8[8192]{0}', space=vmem, size = 0x2000, scoped, tag = 'input window, operand 0']
    #allocation5 [shape = 's32[2]{0}', space=sflag, size = 0x8, scoped, tag = 'scoped memory for tpu_custom_call.1']
    #allocation6 [shape = 's32[2]{0}', space=sflag, size = 0x8, scoped, tag = 'scoped memory for tpu_custom_call.1']
    #allocation7 [shape = 'u8[1024]{0}', space=vmem, size = 0x400, scoped, tag = 'input window, operand 2']
    #allocation8 [shape = 's32[2]{0}', space=sflag, size = 0x8, scoped, tag = 'scoped memory for tpu_custom_call.1']
    #allocation9 [shape = 'u8[1024]{0}', space=vmem, size = 0x400, scoped, tag = 'input window, operand 9']
    #allocation10 [shape = 'u8[1024]{0}', space=vmem, size = 0x400, scoped, tag = 'input window, operand 11']
    #allocation11 [shape = 's32[2]{0}', space=sflag, size = 0x8, scoped, tag = 'scoped memory for tpu_custom_call.1']
    #allocation12 [shape = 'u8[8192]{0}', space=vmem, size = 0x2000, scoped, tag = 'input window, operand 13, single buffered']
    #allocation13 [shape = 'u8[1024]{0}', space=vmem, size = 0x400, scoped, tag = 'output window, operand 0']
    %20 = vsyncpa [#allocation5], 0
    %s21 = scalar_lea.sflag [#allocation5], 1
    %22 = vsyncpa %s21, 0
    %23 = vsyncpa [#allocation8], 0
    %s24 = scalar_lea.sflag [#allocation8], 1
    %25 = vsyncpa %s24, 0
    %26 = vsyncpa [#allocation11], 0
    %s27 = scalar_lea.sflag [#allocation11], 1
    %28 = vsyncpa %s27, 0
    %29 = vsyncpa [#allocation6], 0
    %s30 = scalar_lea.sflag [#allocation6], 1
    %31 = vsyncpa %s30, 0
    loop: start=0, step=1, limit=6
    $region2: #{tpu_custom_call.1} parent=1 // loop_pre_header
      _
    $region3: #{tpu_custom_call.1} parent=1 // loop_header
      %s33 = sphi 0, %s37
      %p34 = scmp.ge.s32.totalorder %s33, 6
      %s40 = sphi 0, %s52
      %s41 = sphi 0, %s48
      %s42 = sphi 0, %s40
      %s43 = sphi 0, %s41
      %s44 = sphi 0, %s42
      %s45 = sphi 0, %s43
      %s55 = sphi 0, %s57
      %s58 = sphi 0, %s55
      %s59 = sphi 0, %s58
      %s75 = sphi 0, %s59
      %s81 = sphi 0, %s83
      %s84 = sphi 0, %s81
      %s85 = sphi 0, %s84
      %s101 = sphi 0, %s85
      %s107 = sphi 0, %s109
      %s110 = sphi 0, %s107
      %s111 = sphi 0, %s110
      %s127 = sphi 0, %s111
      %s133 = sphi 0, %s135
      %s136 = sphi 0, %s133
      %s137 = sphi 0, %s136
      %s153 = sphi 0, %s137
      %s159 = sphi 0, %s161
      %s162 = sphi 0, %s159
      %s163 = sphi 0, %s162
      %s179 = sphi 0, %s163
      %s185 = sphi 0, %s187
      %s188 = sphi 0, %s185
      %s189 = sphi 0, %s188
      %s205 = sphi 0, %s189
      %s211 = sphi 0, %s213
      %s214 = sphi 0, %s211
      %s215 = sphi 0, %s214
      %s231 = sphi 0, %s215
      %s237 = sphi 0, %s239
      %s240 = sphi 0, %s237
      %s241 = sphi 0, %s240
      %s257 = sphi 0, %s241
      %s263 = sphi 0, %s265
      %s266 = sphi 0, %s263
      %s267 = sphi 0, %s266
      %s283 = sphi 0, %s267
      %s289 = sphi 0, %s291
      %s292 = sphi 0, %s289
      %s293 = sphi 0, %s292
      %s309 = sphi 0, %s293
      %s315 = sphi 0, %s317
      %s318 = sphi 0, %s315
      %s319 = sphi 0, %s318
      %s335 = sphi 0, %s319
      %s341 = sphi 0, %s343
      %s344 = sphi 0, %s341
      %s345 = sphi 0, %s344
      %s361 = sphi 0, %s345
      %s367 = sphi 0, %s369
      %s370 = sphi 0, %s367
      %s371 = sphi 0, %s370
      %s387 = sphi 0, %s371
      %s391 = sphi 0, %s391
      %s393 = sphi 0, %s391
      %s394 = sphi 0, %s393
      %s408 = sphi 0, %s394
      %s412 = sphi 0, %s412
      %s414 = sphi 0, %s412
      %s415 = sphi 0, %s414
      %s429 = sphi 0, %s415
      %s435 = sphi 0, %s437
      %s438 = sphi 0, %s435
      %s439 = sphi 0, %s438
      %s455 = sphi 0, %s439
    $region4: #{tpu_custom_call.1} parent=1 // loop_header_branch
      %36 = sbr.rel (%p34) target = $region8
    $region5: #{tpu_custom_call.1} parent=1 // loop_body
      %s38 = ssub.s32 %s33, 1
      %s39 = ssub.s32 %s33, 2
      %s46 = sadd.s32 1, %s41
      %p47 = scmp.ge.s32.totalorder %s46, 2
      %s48 = scalar_select %p47, 0, %s46
      %s49 = sadd.s32 1, %s40
      %s50 = scalar_select %p47, %s49, %s40
      %p51 = scmp.ge.s32.totalorder %s50, 2
      %s52 = scalar_select %p51, 0, %s50
      %s53 = ssub.s32 %s40, %s52
      %p54 = scmp.eq.s32.totalorder %s53, 0
      %s56 = sadd.s32 %s55, 1
      %s57 = scalar_select %p54, %s55, %s56
      %p60 = pneg %p54
      %p61 = scmp.eq.s32.totalorder %s33, 3
      %p62 = por %p60, %p61
      %p63 = scmp.ne.s32.totalorder %s55, %s58
      %p64 = scmp.eq.s32.totalorder %s33, 0
      %p65 = por %p63, %p64
      %p66 = scmp.ne.s32.totalorder %s55, %s58
      %p67 = scmp.eq.s32.totalorder %s38, 3
      %p68 = por %p66, %p67
      %p69 = scmp.ne.s32.totalorder %s58, %s59
      %p70 = scmp.eq.s32.totalorder %s38, 0
      %p71 = por %p69, %p70
      %p72 = scmp.ne.s32.totalorder %s58, %s59
      %p73 = scmp.eq.s32.totalorder %s39, 3
      %p74 = por %p72, %p73
      %p76 = scmp.ne.s32.totalorder %s59, %s75
      %p77 = scmp.eq.s32.totalorder %s39, 0
      %p78 = por %p76, %p77
      %s79 = ssub.s32 %s41, %s48
      %p80 = scmp.eq.s32.totalorder %s79, 0
      %s82 = sadd.s32 %s81, 1
      %s83 = scalar_select %p80, %s81, %s82
      %p86 = pneg %p80
      %p87 = scmp.eq.s32.totalorder %s33, 3
      %p88 = por %p86, %p87
      %p89 = scmp.ne.s32.totalorder %s81, %s84
      %p90 = scmp.eq.s32.totalorder %s33, 0
      %p91 = por %p89, %p90
      %p92 = scmp.ne.s32.totalorder %s81, %s84
      %p93 = scmp.eq.s32.totalorder %s38, 3
      %p94 = por %p92, %p93
      %p95 = scmp.ne.s32.totalorder %s84, %s85
      %p96 = scmp.eq.s32.totalorder %s38, 0
      %p97 = por %p95, %p96
      %p98 = scmp.ne.s32.totalorder %s84, %s85
      %p99 = scmp.eq.s32.totalorder %s39, 3
      %p100 = por %p98, %p99
      %p102 = scmp.ne.s32.totalorder %s85, %s101
      %p103 = scmp.eq.s32.totalorder %s39, 0
      %p104 = por %p102, %p103
      %s105 = ssub.s32 %s41, %s48
      %p106 = scmp.eq.s32.totalorder %s105, 0
      %s108 = sadd.s32 %s107, 1
      %s109 = scalar_select %p106, %s107, %s108
      %p112 = pneg %p106
      %p113 = scmp.eq.s32.totalorder %s33, 3
      %p114 = por %p112, %p113
      %p115 = scmp.ne.s32.totalorder %s107, %s110
      %p116 = scmp.eq.s32.totalorder %s33, 0
      %p117 = por %p115, %p116
      %p118 = scmp.ne.s32.totalorder %s107, %s110
      %p119 = scmp.eq.s32.totalorder %s38, 3
      %p120 = por %p118, %p119
      %p121 = scmp.ne.s32.totalorder %s110, %s111
      %p122 = scmp.eq.s32.totalorder %s38, 0
      %p123 = por %p121, %p122
      %p124 = scmp.ne.s32.totalorder %s110, %s111
      %p125 = scmp.eq.s32.totalorder %s39, 3
      %p126 = por %p124, %p125
      %p128 = scmp.ne.s32.totalorder %s111, %s127
      %p129 = scmp.eq.s32.totalorder %s39, 0
      %p130 = por %p128, %p129
      %s131 = ssub.s32 %s41, %s48
      %p132 = scmp.eq.s32.totalorder %s131, 0
      %s134 = sadd.s32 %s133, 1
      %s135 = scalar_select %p132, %s133, %s134
      %p138 = pneg %p132
      %p139 = scmp.eq.s32.totalorder %s33, 3
      %p140 = por %p138, %p139
      %p141 = scmp.ne.s32.totalorder %s133, %s136
      %p142 = scmp.eq.s32.totalorder %s33, 0
      %p143 = por %p141, %p142
      %p144 = scmp.ne.s32.totalorder %s133, %s136
      %p145 = scmp.eq.s32.totalorder %s38, 3
      %p146 = por %p144, %p145
      %p147 = scmp.ne.s32.totalorder %s136, %s137
      %p148 = scmp.eq.s32.totalorder %s38, 0
      %p149 = por %p147, %p148
      %p150 = scmp.ne.s32.totalorder %s136, %s137
      %p151 = scmp.eq.s32.totalorder %s39, 3
      %p152 = por %p150, %p151
      %p154 = scmp.ne.s32.totalorder %s137, %s153
      %p155 = scmp.eq.s32.totalorder %s39, 0
      %p156 = por %p154, %p155
      %s157 = ssub.s32 %s41, %s48
      %p158 = scmp.eq.s32.totalorder %s157, 0
      %s160 = sadd.s32 %s159, 1
      %s161 = scalar_select %p158, %s159, %s160
      %p164 = pneg %p158
      %p165 = scmp.eq.s32.totalorder %s33, 3
      %p166 = por %p164, %p165
      %p167 = scmp.ne.s32.totalorder %s159, %s162
      %p168 = scmp.eq.s32.totalorder %s33, 0
      %p169 = por %p167, %p168
      %p170 = scmp.ne.s32.totalorder %s159, %s162
      %p171 = scmp.eq.s32.totalorder %s38, 3
      %p172 = por %p170, %p171
      %p173 = scmp.ne.s32.totalorder %s162, %s163
      %p174 = scmp.eq.s32.totalorder %s38, 0
      %p175 = por %p173, %p174
      %p176 = scmp.ne.s32.totalorder %s162, %s163
      %p177 = scmp.eq.s32.totalorder %s39, 3
      %p178 = por %p176, %p177
      %p180 = scmp.ne.s32.totalorder %s163, %s179
      %p181 = scmp.eq.s32.totalorder %s39, 0
      %p182 = por %p180, %p181
      %s183 = ssub.s32 %s41, %s48
      %p184 = scmp.eq.s32.totalorder %s183, 0
      %s186 = sadd.s32 %s185, 1
      %s187 = scalar_select %p184, %s185, %s186
      %p190 = pneg %p184
      %p191 = scmp.eq.s32.totalorder %s33, 3
      %p192 = por %p190, %p191
      %p193 = scmp.ne.s32.totalorder %s185, %s188
      %p194 = scmp.eq.s32.totalorder %s33, 0
      %p195 = por %p193, %p194
      %p196 = scmp.ne.s32.totalorder %s185, %s188
      %p197 = scmp.eq.s32.totalorder %s38, 3
      %p198 = por %p196, %p197
      %p199 = scmp.ne.s32.totalorder %s188, %s189
      %p200 = scmp.eq.s32.totalorder %s38, 0
      %p201 = por %p199, %p200
      %p202 = scmp.ne.s32.totalorder %s188, %s189
      %p203 = scmp.eq.s32.totalorder %s39, 3
      %p204 = por %p202, %p203
      %p206 = scmp.ne.s32.totalorder %s189, %s205
      %p207 = scmp.eq.s32.totalorder %s39, 0
      %p208 = por %p206, %p207
      %s209 = ssub.s32 %s41, %s48
      %p210 = scmp.eq.s32.totalorder %s209, 0
      %s212 = sadd.s32 %s211, 1
      %s213 = scalar_select %p210, %s211, %s212
      %p216 = pneg %p210
      %p217 = scmp.eq.s32.totalorder %s33, 3
      %p218 = por %p216, %p217
      %p219 = scmp.ne.s32.totalorder %s211, %s214
      %p220 = scmp.eq.s32.totalorder %s33, 0
      %p221 = por %p219, %p220
      %p222 = scmp.ne.s32.totalorder %s211, %s214
      %p223 = scmp.eq.s32.totalorder %s38, 3
      %p224 = por %p222, %p223
      %p225 = scmp.ne.s32.totalorder %s214, %s215
      %p226 = scmp.eq.s32.totalorder %s38, 0
      %p227 = por %p225, %p226
      %p228 = scmp.ne.s32.totalorder %s214, %s215
      %p229 = scmp.eq.s32.totalorder %s39, 3
      %p230 = por %p228, %p229
      %p232 = scmp.ne.s32.totalorder %s215, %s231
      %p233 = scmp.eq.s32.totalorder %s39, 0
      %p234 = por %p232, %p233
      %s235 = ssub.s32 %s41, %s48
      %p236 = scmp.eq.s32.totalorder %s235, 0
      %s238 = sadd.s32 %s237, 1
      %s239 = scalar_select %p236, %s237, %s238
      %p242 = pneg %p236
      %p243 = scmp.eq.s32.totalorder %s33, 3
      %p244 = por %p242, %p243
      %p245 = scmp.ne.s32.totalorder %s237, %s240
      %p246 = scmp.eq.s32.totalorder %s33, 0
      %p247 = por %p245, %p246
      %p248 = scmp.ne.s32.totalorder %s237, %s240
      %p249 = scmp.eq.s32.totalorder %s38, 3
      %p250 = por %p248, %p249
      %p251 = scmp.ne.s32.totalorder %s240, %s241
      %p252 = scmp.eq.s32.totalorder %s38, 0
      %p253 = por %p251, %p252
      %p254 = scmp.ne.s32.totalorder %s240, %s241
      %p255 = scmp.eq.s32.totalorder %s39, 3
      %p256 = por %p254, %p255
      %p258 = scmp.ne.s32.totalorder %s241, %s257
      %p259 = scmp.eq.s32.totalorder %s39, 0
      %p260 = por %p258, %p259
      %s261 = ssub.s32 %s41, %s48
      %p262 = scmp.eq.s32.totalorder %s261, 0
      %s264 = sadd.s32 %s263, 1
      %s265 = scalar_select %p262, %s263, %s264
      %p268 = pneg %p262
      %p269 = scmp.eq.s32.totalorder %s33, 3
      %p270 = por %p268, %p269
      %p271 = scmp.ne.s32.totalorder %s263, %s266
      %p272 = scmp.eq.s32.totalorder %s33, 0
      %p273 = por %p271, %p272
      %p274 = scmp.ne.s32.totalorder %s263, %s266
      %p275 = scmp.eq.s32.totalorder %s38, 3
      %p276 = por %p274, %p275
      %p277 = scmp.ne.s32.totalorder %s266, %s267
      %p278 = scmp.eq.s32.totalorder %s38, 0
      %p279 = por %p277, %p278
      %p280 = scmp.ne.s32.totalorder %s266, %s267
      %p281 = scmp.eq.s32.totalorder %s39, 3
      %p282 = por %p280, %p281
      %p284 = scmp.ne.s32.totalorder %s267, %s283
      %p285 = scmp.eq.s32.totalorder %s39, 0
      %p286 = por %p284, %p285
      %s287 = ssub.s32 %s41, %s48
      %p288 = scmp.eq.s32.totalorder %s287, 0
      %s290 = sadd.s32 %s289, 1
      %s291 = scalar_select %p288, %s289, %s290
      %p294 = pneg %p288
      %p295 = scmp.eq.s32.totalorder %s33, 3
      %p296 = por %p294, %p295
      %p297 = scmp.ne.s32.totalorder %s289, %s292
      %p298 = scmp.eq.s32.totalorder %s33, 0
      %p299 = por %p297, %p298
      %p300 = scmp.ne.s32.totalorder %s289, %s292
      %p301 = scmp.eq.s32.totalorder %s38, 3
      %p302 = por %p300, %p301
      %p303 = scmp.ne.s32.totalorder %s292, %s293
      %p304 = scmp.eq.s32.totalorder %s38, 0
      %p305 = por %p303, %p304
      %p306 = scmp.ne.s32.totalorder %s292, %s293
      %p307 = scmp.eq.s32.totalorder %s39, 3
      %p308 = por %p306, %p307
      %p310 = scmp.ne.s32.totalorder %s293, %s309
      %p311 = scmp.eq.s32.totalorder %s39, 0
      %p312 = por %p310, %p311
      %s313 = ssub.s32 %s41, %s48
      %p314 = scmp.eq.s32.totalorder %s313, 0
      %s316 = sadd.s32 %s315, 1
      %s317 = scalar_select %p314, %s315, %s316
      %p320 = pneg %p314
      %p321 = scmp.eq.s32.totalorder %s33, 3
      %p322 = por %p320, %p321
      %p323 = scmp.ne.s32.totalorder %s315, %s318
      %p324 = scmp.eq.s32.totalorder %s33, 0
      %p325 = por %p323, %p324
      %p326 = scmp.ne.s32.totalorder %s315, %s318
      %p327 = scmp.eq.s32.totalorder %s38, 3
      %p328 = por %p326, %p327
      %p329 = scmp.ne.s32.totalorder %s318, %s319
      %p330 = scmp.eq.s32.totalorder %s38, 0
      %p331 = por %p329, %p330
      %p332 = scmp.ne.s32.totalorder %s318, %s319
      %p333 = scmp.eq.s32.totalorder %s39, 3
      %p334 = por %p332, %p333
      %p336 = scmp.ne.s32.totalorder %s319, %s335
      %p337 = scmp.eq.s32.totalorder %s39, 0
      %p338 = por %p336, %p337
      %s339 = ssub.s32 %s41, %s48
      %p340 = scmp.eq.s32.totalorder %s339, 0
      %s342 = sadd.s32 %s341, 1
      %s343 = scalar_select %p340, %s341, %s342
      %p346 = pneg %p340
      %p347 = scmp.eq.s32.totalorder %s33, 3
      %p348 = por %p346, %p347
      %p349 = scmp.ne.s32.totalorder %s341, %s344
      %p350 = scmp.eq.s32.totalorder %s33, 0
      %p351 = por %p349, %p350
      %p352 = scmp.ne.s32.totalorder %s341, %s344
      %p353 = scmp.eq.s32.totalorder %s38, 3
      %p354 = por %p352, %p353
      %p355 = scmp.ne.s32.totalorder %s344, %s345
      %p356 = scmp.eq.s32.totalorder %s38, 0
      %p357 = por %p355, %p356
      %p358 = scmp.ne.s32.totalorder %s344, %s345
      %p359 = scmp.eq.s32.totalorder %s39, 3
      %p360 = por %p358, %p359
      %p362 = scmp.ne.s32.totalorder %s345, %s361
      %p363 = scmp.eq.s32.totalorder %s39, 0
      %p364 = por %p362, %p363
      %s365 = ssub.s32 %s41, %s48
      %p366 = scmp.eq.s32.totalorder %s365, 0
      %s368 = sadd.s32 %s367, 1
      %s369 = scalar_select %p366, %s367, %s368
      %p372 = pneg %p366
      %p373 = scmp.eq.s32.totalorder %s33, 3
      %p374 = por %p372, %p373
      %p375 = scmp.ne.s32.totalorder %s367, %s370
      %p376 = scmp.eq.s32.totalorder %s33, 0
      %p377 = por %p375, %p376
      %p378 = scmp.ne.s32.totalorder %s367, %s370
      %p379 = scmp.eq.s32.totalorder %s38, 3
      %p380 = por %p378, %p379
      %p381 = scmp.ne.s32.totalorder %s370, %s371
      %p382 = scmp.eq.s32.totalorder %s38, 0
      %p383 = por %p381, %p382
      %p384 = scmp.ne.s32.totalorder %s370, %s371
      %p385 = scmp.eq.s32.totalorder %s39, 3
      %p386 = por %p384, %p385
      %p388 = scmp.ne.s32.totalorder %s371, %s387
      %p389 = scmp.eq.s32.totalorder %s39, 0
      %p390 = por %p388, %p389
      %s392 = sadd.s32 %s391, 1
      %p395 = scmp.eq.s32.totalorder %s33, 3
      %p396 = scmp.ne.s32.totalorder %s391, %s393
      %p397 = scmp.eq.s32.totalorder %s33, 0
      %p398 = por %p396, %p397
      %p399 = scmp.ne.s32.totalorder %s391, %s393
      %p400 = scmp.eq.s32.totalorder %s38, 3
      %p401 = por %p399, %p400
      %p402 = scmp.ne.s32.totalorder %s393, %s394
      %p403 = scmp.eq.s32.totalorder %s38, 0
      %p404 = por %p402, %p403
      %p405 = scmp.ne.s32.totalorder %s393, %s394
      %p406 = scmp.eq.s32.totalorder %s39, 3
      %p407 = por %p405, %p406
      %p409 = scmp.ne.s32.totalorder %s394, %s408
      %p410 = scmp.eq.s32.totalorder %s39, 0
      %p411 = por %p409, %p410
      %s413 = sadd.s32 %s412, 1
      %p416 = scmp.eq.s32.totalorder %s33, 3
      %p417 = scmp.ne.s32.totalorder %s412, %s414
      %p418 = scmp.eq.s32.totalorder %s33, 0
      %p419 = por %p417, %p418
      %p420 = scmp.ne.s32.totalorder %s412, %s414
      %p421 = scmp.eq.s32.totalorder %s38, 3
      %p422 = por %p420, %p421
      %p423 = scmp.ne.s32.totalorder %s414, %s415
      %p424 = scmp.eq.s32.totalorder %s38, 0
      %p425 = por %p423, %p424
      %p426 = scmp.ne.s32.totalorder %s414, %s415
      %p427 = scmp.eq.s32.totalorder %s39, 3
      %p428 = por %p426, %p427
      %p430 = scmp.ne.s32.totalorder %s415, %s429
      %p431 = scmp.eq.s32.totalorder %s39, 0
      %p432 = por %p430, %p431
      %s433 = ssub.s32 %s40, %s52
      %p434 = scmp.eq.s32.totalorder %s433, 0
      %s436 = sadd.s32 %s435, 1
      %s437 = scalar_select %p434, %s435, %s436
      %p440 = pneg %p434
      %p441 = scmp.eq.s32.totalorder %s33, 3
      %p442 = por %p440, %p441
      %p443 = scmp.ne.s32.totalorder %s435, %s438
      %p444 = scmp.eq.s32.totalorder %s33, 0
      %p445 = por %p443, %p444
      %p446 = scmp.ne.s32.totalorder %s435, %s438
      %p447 = scmp.eq.s32.totalorder %s38, 3
      %p448 = por %p446, %p447
      %p449 = scmp.ne.s32.totalorder %s438, %s439
      %p450 = scmp.eq.s32.totalorder %s38, 0
      %p451 = por %p449, %p450
      %p452 = scmp.ne.s32.totalorder %s438, %s439
      %p453 = scmp.eq.s32.totalorder %s39, 3
      %p454 = por %p452, %p453
      %p456 = scmp.ne.s32.totalorder %s439, %s455
      %p457 = scmp.eq.s32.totalorder %s39, 0
      %p458 = por %p456, %p457
      %p459 = scmp.le.s32.totalorder 1, %s33
      %p460 = scmp.lt.s32.totalorder %s33, 5
      %p461 = pnand %p459, %p460
      %p462 = pneg %p461
      // Predicated region
      $region9: #{tpu_custom_call.1} parent=5 // pred_check
        _
      $region10: #{tpu_custom_call.1} parent=5 // pred_check_branch
        %464 = sbr.rel (%p461) target = $region12
      $region11: #{tpu_custom_call.1} parent=5 // pred_region
        %s465 = ssub.s32 %s33, 1
        // Predicated region
        $region13: #{tpu_custom_call.1} parent=11 // pred_check
          %p466 = pneg %p404
        $region14: #{tpu_custom_call.1} parent=11 // pred_check_branch
          %468 = sbr.rel (%p466) target = $region16
        $region15: #{tpu_custom_call.1} parent=11 // pred_region
          %470 = vsyncadd [#allocation11], 0
          %s471 = sshll.u32 %s13, 4
          %s472 = int_to_ptr.hbm [resolvable:$true] %s471
          %s473 = sshll.u32 [#allocation12], 4
          %s474 = int_to_ptr.vmem [resolvable:$true] %s473
          %479 = dma.hbm_to_vmem [thread:$0]  %s472, 256, %s474, [#allocation11], 64, 64, 4
        $region16: #{tpu_custom_call.1} parent=11 // pred_fallthru
          _
        // Predicated region
        $region17: #{tpu_custom_call.1} parent=11 // pred_check
          %p480 = pneg %p425
        $region18: #{tpu_custom_call.1} parent=11 // pred_check_branch
          %482 = sbr.rel (%p480) target = $region20
        $region19: #{tpu_custom_call.1} parent=11 // pred_region
          _
        $region20: #{tpu_custom_call.1} parent=11 // pred_fallthru
          _
      $region12: #{tpu_custom_call.1} parent=5 // pred_fallthru
        _
      %p483 = scmp.lt.s32.totalorder %s33, 4
      // Predicated region
      $region21: #{tpu_custom_call.1} parent=5 // pred_check
        %p484 = pneg %p483
      $region22: #{tpu_custom_call.1} parent=5 // pred_check_branch
        %486 = sbr.rel (%p484) target = $region24
      $region23: #{tpu_custom_call.1} parent=5 // pred_region
        // Predicated region
        $region25: #{tpu_custom_call.1} parent=23 // pred_check
          %p487 = pneg %p65
        $region26: #{tpu_custom_call.1} parent=23 // pred_check_branch
          %489 = sbr.rel (%p487) target = $region28
        $region27: #{tpu_custom_call.1} parent=23 // pred_region
          %s490 = sand.u32 %s55, 1
          %s491 = scalar_lea.sflag [#allocation5], %s490
          %s492 = sand.u32 %s55, 1
          %s493 = smul.addr %s492, 8
          %s494 = scalar_lea.vmem [#allocation4], %s493
          %496 = vsyncadd %s491, 0
          %s497 = smul.addr %s40, 8
          %s498 = scalar_lea.hbm %s0, %s497
          %s500 = sshll.u32 %s498, 4
          %s501 = int_to_ptr.hbm [resolvable:$true] %s500
          %s502 = sshll.u32 %s494, 4
          %s503 = int_to_ptr.vmem [resolvable:$true] %s502
          %505 = dma.hbm_to_vmem [thread:$0]  %s501, 128, %s503, %s491
        $region28: #{tpu_custom_call.1} parent=23 // pred_fallthru
          _
        // Predicated region
        $region29: #{tpu_custom_call.1} parent=23 // pred_check
          %p506 = pneg %p91
        $region30: #{tpu_custom_call.1} parent=23 // pred_check_branch
          %508 = sbr.rel (%p506) target = $region32
        $region31: #{tpu_custom_call.1} parent=23 // pred_region
          %p509 = scmp.lt.s32.totalorder %s41, 1
          %s510 = scalar_select %p509, %s41, 1
          %s511 = smul.addr %s510, 4
          %s512 = smul.addr %s511, 4
          %s513 = scalar_lea.vmem %s1, %s512
        $region32: #{tpu_custom_call.1} parent=23 // pred_fallthru
          _
        // Predicated region
        $region33: #{tpu_custom_call.1} parent=23 // pred_check
          %p514 = pneg %p117
        $region34: #{tpu_custom_call.1} parent=23 // pred_check_branch
          %516 = sbr.rel (%p514) target = $region36
        $region35: #{tpu_custom_call.1} parent=23 // pred_region
          %s517 = sand.u32 %s33, 1
          %s518 = scalar_lea.sflag [#allocation8], %s517
          %s519 = sand.u32 %s107, 1
          %s520 = scalar_lea.vmem [#allocation7], %s519
          %522 = vsyncadd %s518, 0
          %s523 = scalar_lea.hbm %s2, %s41
          %s525 = sshll.u32 %s523, 4
          %s526 = int_to_ptr.hbm [resolvable:$true] %s525
          %s527 = sshll.u32 %s520, 4
          %s528 = int_to_ptr.vmem [resolvable:$true] %s527
          %530 = dma.hbm_to_vmem [thread:$0]  %s526, 16, %s528, %s518
        $region36: #{tpu_custom_call.1} parent=23 // pred_fallthru
          _
        // Predicated region
        $region37: #{tpu_custom_call.1} parent=23 // pred_check
          %p531 = pneg %p143
        $region38: #{tpu_custom_call.1} parent=23 // pred_check_branch
          %533 = sbr.rel (%p531) target = $region40
        $region39: #{tpu_custom_call.1} parent=23 // pred_region
          %p534 = scmp.lt.s32.totalorder %s41, 1
          %s535 = scalar_select %p534, %s41, 1
          %s536 = smul.addr %s535, 4
          %s537 = smul.addr %s536, 4
          %s538 = scalar_lea.vmem %s3, %s537
        $region40: #{tpu_custom_call.1} parent=23 // pred_fallthru
          _
        // Predicated region
        $region41: #{tpu_custom_call.1} parent=23 // pred_check
          %p539 = pneg %p169
        $region42: #{tpu_custom_call.1} parent=23 // pred_check_branch
          %541 = sbr.rel (%p539) target = $region44
        $region43: #{tpu_custom_call.1} parent=23 // pred_region
          %p542 = scmp.lt.s32.totalorder %s41, 1
          %s543 = scalar_select %p542, %s41, 1
          %s544 = scalar_lea.vmem %s4, %s543
        $region44: #{tpu_custom_call.1} parent=23 // pred_fallthru
          _
        // Predicated region
        $region45: #{tpu_custom_call.1} parent=23 // pred_check
          %p545 = pneg %p195
        $region46: #{tpu_custom_call.1} parent=23 // pred_check_branch
          %547 = sbr.rel (%p545) target = $region48
        $region47: #{tpu_custom_call.1} parent=23 // pred_region
          %p548 = scmp.lt.s32.totalorder %s41, 1
          %s549 = scalar_select %p548, %s41, 1
          %s550 = smul.addr %s549, 4
          %s551 = smul.addr %s550, 4
          %s552 = scalar_lea.vmem %s5, %s551
        $region48: #{tpu_custom_call.1} parent=23 // pred_fallthru
          _
        // Predicated region
        $region49: #{tpu_custom_call.1} parent=23 // pred_check
          %p553 = pneg %p221
        $region50: #{tpu_custom_call.1} parent=23 // pred_check_branch
          %555 = sbr.rel (%p553) target = $region52
        $region51: #{tpu_custom_call.1} parent=23 // pred_region
          %p556 = scmp.lt.s32.totalorder %s41, 1
          %s557 = scalar_select %p556, %s41, 1
          %s558 = scalar_lea.vmem %s6, %s557
        $region52: #{tpu_custom_call.1} parent=23 // pred_fallthru
          _
        // Predicated region
        $region53: #{tpu_custom_call.1} parent=23 // pred_check
          %p559 = pneg %p247
        $region54: #{tpu_custom_call.1} parent=23 // pred_check_branch
          %561 = sbr.rel (%p559) target = $region56
        $region55: #{tpu_custom_call.1} parent=23 // pred_region
          %p562 = scmp.lt.s32.totalorder %s41, 1
          %s563 = scalar_select %p562, %s41, 1
          %s564 = smul.addr %s563, 8
          %s565 = smul.addr %s564, 4
          %s566 = scalar_lea.vmem %s7, %s565
        $region56: #{tpu_custom_call.1} parent=23 // pred_fallthru
          _
        // Predicated region
        $region57: #{tpu_custom_call.1} parent=23 // pred_check
          %p567 = pneg %p273
        $region58: #{tpu_custom_call.1} parent=23 // pred_check_branch
          %569 = sbr.rel (%p567) target = $region60
        $region59: #{tpu_custom_call.1} parent=23 // pred_region
          %p570 = scmp.lt.s32.totalorder %s41, 1
          %s571 = scalar_select %p570, %s41, 1
          %s572 = scalar_lea.vmem %s8, %s571
        $region60: #{tpu_custom_call.1} parent=23 // pred_fallthru
          _
        // Predicated region
        $region61: #{tpu_custom_call.1} parent=23 // pred_check
          %p573 = pneg %p299
        $region62: #{tpu_custom_call.1} parent=23 // pred_check_branch
          %575 = sbr.rel (%p573) target = $region64
        $region63: #{tpu_custom_call.1} parent=23 // pred_region
          %s576 = sand.u32 %s33, 1
          %s577 = scalar_lea.sflag [#allocation8], %s576
          %s578 = sand.u32 %s289, 1
          %s579 = scalar_lea.vmem [#allocation9], %s578
          %581 = vsyncadd %s577, 0
          %s582 = scalar_lea.hbm %s9, %s41
          %s584 = sshll.u32 %s582, 4
          %s585 = int_to_ptr.hbm [resolvable:$true] %s584
          %s586 = sshll.u32 %s579, 4
          %s587 = int_to_ptr.vmem [resolvable:$true] %s586
          %589 = dma.hbm_to_vmem [thread:$0]  %s585, 16, %s587, %s577
        $region64: #{tpu_custom_call.1} parent=23 // pred_fallthru
          _
        // Predicated region
        $region65: #{tpu_custom_call.1} parent=23 // pred_check
          %p590 = pneg %p325
        $region66: #{tpu_custom_call.1} parent=23 // pred_check_branch
          %592 = sbr.rel (%p590) target = $region68
        $region67: #{tpu_custom_call.1} parent=23 // pred_region
          %p593 = scmp.lt.s32.totalorder %s41, 1
          %s594 = scalar_select %p593, %s41, 1
          %s595 = scalar_lea.vmem %s10, %s594
        $region68: #{tpu_custom_call.1} parent=23 // pred_fallthru
          _
        // Predicated region
        $region69: #{tpu_custom_call.1} parent=23 // pred_check
          %p596 = pneg %p351
        $region70: #{tpu_custom_call.1} parent=23 // pred_check_branch
          %598 = sbr.rel (%p596) target = $region72
        $region71: #{tpu_custom_call.1} parent=23 // pred_region
          %s599 = sand.u32 %s33, 1
          %s600 = scalar_lea.sflag [#allocation11], %s599
          %s601 = sand.u32 %s341, 1
          %s602 = scalar_lea.vmem [#allocation10], %s601
          %604 = vsyncadd %s600, 0
          %s605 = scalar_lea.hbm %s11, %s41
          %s607 = sshll.u32 %s605, 4
          %s608 = int_to_ptr.hbm [resolvable:$true] %s607
          %s609 = sshll.u32 %s602, 4
          %s610 = int_to_ptr.vmem [resolvable:$true] %s609
          %612 = dma.hbm_to_vmem [thread:$0]  %s608, 16, %s610, %s600
        $region72: #{tpu_custom_call.1} parent=23 // pred_fallthru
          _
        // Predicated region
        $region73: #{tpu_custom_call.1} parent=23 // pred_check
          %p613 = pneg %p377
        $region74: #{tpu_custom_call.1} parent=23 // pred_check_branch
          %615 = sbr.rel (%p613) target = $region76
        $region75: #{tpu_custom_call.1} parent=23 // pred_region
          %p616 = scmp.lt.s32.totalorder %s41, 1
          %s617 = scalar_select %p616, %s41, 1
          %s618 = scalar_lea.vmem %s12, %s617
        $region76: #{tpu_custom_call.1} parent=23 // pred_fallthru
          _
      $region24: #{tpu_custom_call.1} parent=5 // pred_fallthru
        _
      %p619 = scmp.le.s32.totalorder 1, %s33
      %p620 = scmp.lt.s32.totalorder %s33, 5
      %p621 = pnand %p619, %p620
      %p622 = pneg %p621
      // Predicated region
      $region77: #{tpu_custom_call.1} parent=5 // pred_check
        _
      $region78: #{tpu_custom_call.1} parent=5 // pred_check_branch
        %624 = sbr.rel (%p621) target = $region80
      $region79: #{tpu_custom_call.1} parent=5 // pred_region
        %s625 = ssub.s32 %s33, 1
        %s626 = sand.u32 %s58, 1
        %s627 = scalar_lea.sflag [#allocation5], %s626
        %s628 = sand.u32 %s58, 1
        %s629 = smul.addr %s628, 8
        %s630 = scalar_lea.vmem [#allocation4], %s629
        // Predicated region
        $region81: #{tpu_custom_call.1} parent=79 // pred_check
          %p631 = pneg %p71
        $region82: #{tpu_custom_call.1} parent=79 // pred_check_branch
          %633 = sbr.rel (%p631) target = $region84
        $region83: #{tpu_custom_call.1} parent=79 // pred_region
          %635 = dma.done %s627, 128
        $region84: #{tpu_custom_call.1} parent=79 // pred_fallthru
          _
        %s636 = sand.u32 %s38, 1
        %s637 = scalar_lea.sflag [#allocation8], %s636
        %s638 = sand.u32 %s110, 1
        %s639 = scalar_lea.vmem [#allocation7], %s638
        // Predicated region
        $region85: #{tpu_custom_call.1} parent=79 // pred_check
          %p640 = pneg %p123
        $region86: #{tpu_custom_call.1} parent=79 // pred_check_branch
          %642 = sbr.rel (%p640) target = $region88
        $region87: #{tpu_custom_call.1} parent=79 // pred_region
          %644 = dma.done %s637, 16
        $region88: #{tpu_custom_call.1} parent=79 // pred_fallthru
          _
        %s645 = sand.u32 %s38, 1
        %s646 = scalar_lea.sflag [#allocation8], %s645
        %s647 = sand.u32 %s292, 1
        %s648 = scalar_lea.vmem [#allocation9], %s647
        // Predicated region
        $region89: #{tpu_custom_call.1} parent=79 // pred_check
          %p649 = pneg %p305
        $region90: #{tpu_custom_call.1} parent=79 // pred_check_branch
          %651 = sbr.rel (%p649) target = $region92
        $region91: #{tpu_custom_call.1} parent=79 // pred_region
          %653 = dma.done %s646, 16
        $region92: #{tpu_custom_call.1} parent=79 // pred_fallthru
          _
        %s654 = sand.u32 %s38, 1
        %s655 = scalar_lea.sflag [#allocation11], %s654
        %s656 = sand.u32 %s344, 1
        %s657 = scalar_lea.vmem [#allocation10], %s656
        // Predicated region
        $region93: #{tpu_custom_call.1} parent=79 // pred_check
          %p658 = pneg %p357
        $region94: #{tpu_custom_call.1} parent=79 // pred_check_branch
          %660 = sbr.rel (%p658) target = $region96
        $region95: #{tpu_custom_call.1} parent=79 // pred_region
          %662 = dma.done %s655, 16
        $region96: #{tpu_custom_call.1} parent=79 // pred_fallthru
          _
        // Predicated region
        $region97: #{tpu_custom_call.1} parent=79 // pred_check
          %p663 = pneg %p404
        $region98: #{tpu_custom_call.1} parent=79 // pred_check_branch
          %665 = sbr.rel (%p663) target = $region100
        $region99: #{tpu_custom_call.1} parent=79 // pred_region
          %667 = dma.done [#allocation11], 256
        $region100: #{tpu_custom_call.1} parent=79 // pred_fallthru
          _
        %s668 = sand.u32 %s58, 1
        %s669 = scalar_lea.sflag [#allocation5], %s668
        %s670 = sand.u32 %s58, 1
        %s671 = smul.addr %s670, 8
        %s672 = scalar_lea.vmem [#allocation4], %s671
        %p673 = pneg %p71
        %p674 = pneg %p68
        %p675 = scmp.lt.s32.totalorder %s43, 1
        %s676 = scalar_select %p675, %s43, 1
        %s677 = smul.addr %s676, 4
        %s678 = smul.addr %s677, 4
        %s679 = scalar_lea.vmem %s1, %s678
        %p680 = pneg %p97
        %p681 = pneg %p94
        %s682 = sand.u32 %s38, 1
        %s683 = scalar_lea.sflag [#allocation8], %s682
        %s684 = sand.u32 %s110, 1
        %s685 = scalar_lea.vmem [#allocation7], %s684
        %p686 = pneg %p123
        %p687 = pneg %p120
        %p688 = scmp.lt.s32.totalorder %s43, 1
        %s689 = scalar_select %p688, %s43, 1
        %s690 = smul.addr %s689, 4
        %s691 = smul.addr %s690, 4
        %s692 = scalar_lea.vmem %s3, %s691
        %p693 = pneg %p149
        %p694 = pneg %p146
        %p695 = scmp.lt.s32.totalorder %s43, 1
        %s696 = scalar_select %p695, %s43, 1
        %s697 = scalar_lea.vmem %s4, %s696
        %p698 = pneg %p175
        %p699 = pneg %p172
        %p700 = scmp.lt.s32.totalorder %s43, 1
        %s701 = scalar_select %p700, %s43, 1
        %s702 = smul.addr %s701, 4
        %s703 = smul.addr %s702, 4
        %s704 = scalar_lea.vmem %s5, %s703
        %p705 = pneg %p201
        %p706 = pneg %p198
        %p707 = scmp.lt.s32.totalorder %s43, 1
        %s708 = scalar_select %p707, %s43, 1
        %s709 = scalar_lea.vmem %s6, %s708
        %p710 = pneg %p227
        %p711 = pneg %p224
        %p712 = scmp.lt.s32.totalorder %s43, 1
        %s713 = scalar_select %p712, %s43, 1
        %s714 = smul.addr %s713, 8
        %s715 = smul.addr %s714, 4
        %s716 = scalar_lea.vmem %s7, %s715
        %p717 = pneg %p253
        %p718 = pneg %p250
        %p719 = scmp.lt.s32.totalorder %s43, 1
        %s720 = scalar_select %p719, %s43, 1
        %s721 = scalar_lea.vmem %s8, %s720
        %p722 = pneg %p279
        %p723 = pneg %p276
        %s724 = sand.u32 %s38, 1
        %s725 = scalar_lea.sflag [#allocation8], %s724
        %s726 = sand.u32 %s292, 1
        %s727 = scalar_lea.vmem [#allocation9], %s726
        %p728 = pneg %p305
        %p729 = pneg %p302
        %p730 = scmp.lt.s32.totalorder %s43, 1
        %s731 = scalar_select %p730, %s43, 1
        %s732 = scalar_lea.vmem %s10, %s731
        %p733 = pneg %p331
        %p734 = pneg %p328
        %s735 = sand.u32 %s38, 1
        %s736 = scalar_lea.sflag [#allocation11], %s735
        %s737 = sand.u32 %s344, 1
        %s738 = scalar_lea.vmem [#allocation10], %s737
        %p739 = pneg %p357
        %p740 = pneg %p354
        %p741 = scmp.lt.s32.totalorder %s43, 1
        %s742 = scalar_select %p741, %s43, 1
        %s743 = scalar_lea.vmem %s12, %s742
        %p744 = pneg %p383
        %p745 = pneg %p380
        %p746 = pneg %p404
        %p747 = pneg %p401
        %p748 = pneg %p425
        %p749 = pneg %p422
        %p750 = pneg %p451
        %p751 = pneg %p448
        %s752 = sand.u32 %s438, 1
        %s753 = scalar_lea.sflag [#allocation6], %s752
        %s754 = sand.u32 %s438, 1
        %s755 = scalar_lea.vmem [#allocation13], %s754
        %p756 = scmp.lt.s32.totalorder %s43, 1
        %s757 = scalar_select %p756, %s43, 1
        %s758 = smul.addr %s757, 4
        %s759 = smul.addr %s758, 4
        %s760 = scalar_lea.vmem %s1, %s759
        %p761 = scmp.lt.s32.totalorder %s43, 1
        %s762 = scalar_select %p761, %s43, 1
        %s763 = smul.addr %s762, 4
        %s764 = smul.addr %s763, 4
        %s765 = scalar_lea.vmem %s3, %s764
        %p766 = scmp.lt.s32.totalorder %s43, 1
        %s767 = scalar_select %p766, %s43, 1
        %s768 = scalar_lea.vmem %s4, %s767
        %p769 = scmp.lt.s32.totalorder %s43, 1
        %s770 = scalar_select %p769, %s43, 1
        %s771 = smul.addr %s770, 4
        %s772 = smul.addr %s771, 4
        %s773 = scalar_lea.vmem %s5, %s772
        %p774 = scmp.lt.s32.totalorder %s43, 1
        %s775 = scalar_select %p774, %s43, 1
        %s776 = scalar_lea.vmem %s6, %s775
        %p777 = scmp.lt.s32.totalorder %s43, 1
        %s778 = scalar_select %p777, %s43, 1
        %s779 = smul.addr %s778, 8
        %s780 = smul.addr %s779, 4
        %s781 = scalar_lea.vmem %s7, %s780
        %p782 = scmp.lt.s32.totalorder %s43, 1
        %s783 = scalar_select %p782, %s43, 1
        %s784 = scalar_lea.vmem %s8, %s783
        %p785 = scmp.lt.s32.totalorder %s43, 1
        %s786 = scalar_select %p785, %s43, 1
        %s787 = scalar_lea.vmem %s10, %s786
        %p788 = scmp.lt.s32.totalorder %s43, 1
        %s789 = scalar_select %p788, %s43, 1
        %s790 = scalar_lea.vmem %s12, %s789
        %p792 = scmp.eq.s32.totalorder %s43, 0
        // Predicated region
        $region101: #{tpu_custom_call.1} parent=79 // pred_check
          %p793 = pneg %p792
        $region102: #{tpu_custom_call.1} parent=79 // pred_check_branch
          %795 = sbr.rel (%p793) target = $region104
        $region103: #{tpu_custom_call.1} parent=79 // pred_region
          %v796 = vld [vmem:[%s630] sm:$0xff]
          %vm797 = vcmask 261120
          %798 = vst.msk [vmem:[#allocation2] sm:$0xff] %vm797, %v796
        $region104: #{tpu_custom_call.1} parent=79 // pred_fallthru
          _
        %v799 = vlaneseq
        %v800 = vshrl.u32 %v799, 7
        %v801 = vlaneseq
        %v802 = vand.u32 %v801, 127
        %vm803 = vcmp.gt.s32.totalorder %v802, %v800
        %v804 = vsel %vm803, -inf, 0.0
        %v805 = vld [vmem:[#allocation2] sm:$0xff]
        %v806 = vpack.c.bf16 %v805, %v805
        %v807 = vld [vmem:[%s760] sm:$0xf]
        %v808 = vld [vmem:[%s760 + $0x4] sm:$0xf]
        %v809 = vld [vmem:[%s760 + $0x8] sm:$0xf]
        %v810 = vld [vmem:[%s760 + $0xc] sm:$0xf]
        %v811 = vld [vmem:[%s639] sm:$0x1]
        %v813 = vperm.slane %v811, 0
        %v819 = vunpack.c.l.b16 %v807
        %v820 = vunpack.c.l.b16 %v808
        %v821 = vunpack.c.l.b16 %v809
        %v822 = vunpack.c.l.b16 %v810
        %v823 = vpack.c.b16 %v820, %v819
        %v824 = vpack.c.b16 %v822, %v821
        %vm827 = vcmask 261120
        %v829 = vsel %vm827, %v806, 0
        %831 = vmatpush.bf16.msra.mxu0 0
        %832 = vmatpush.bf16.msra.mxu0 0
        %833 = vmatpush.bf16.msra.mxu0 0
        %834 = vmatpush.bf16.msra.mxu0 0
        %835 = vmatpush.bf16.msra.mxu0 0
        %836 = vmatpush.bf16.msra.mxu0 0
        %837 = vmatpush.bf16.msra.mxu0 %v824
        %838 = vmatpush.bf16.msra.mxu0 %v823
        %839 = vmatmul.bf16.gmra.mxu0 %v829
        %v840 = vpop.f32.mrf.mxu0
        %v841 = vadd.f32 %v813, %v840
        %v842 = vpop.f32.mrf.mxu0
        %843 = vdwg.mxu0
        %v844 = vpack.c.bf16 %v841, %v841
        %v846 = vunpack.c.l.b16 %v844
        %v847 = vpack.c.b16 %v846, %v846
        %848 = vrot.lane.b32.xlu0 %v847, 96
        %v849 = vpop.permute.xlu0 %848
        %vm850 = vcmask 130048
        %v852 = vsel %vm850, %v844, 0
        %v855 = vsel %vm850, %v849, 0
        %857 = vmatpush.bf16.xpose.msra.mxu0 0
        %858 = vmatpush.bf16.xpose.msra.mxu0 0
        %859 = vmatpush.bf16.xpose.msra.mxu0 0
        %860 = vmatpush.bf16.xpose.msra.mxu0 0
        %861 = vmatpush.bf16.xpose.msra.mxu0 0
        %862 = vmatpush.bf16.xpose.msra.mxu0 0
        %863 = vmatpush.bf16.xpose.msra.mxu0 0
        %864 = vmatpush.bf16.xpose.msra.mxu0 %v855
        %865 = vmatmul.bf16.gmra.mxu0 %v852
        %v866 = vpop.f32.mrf.mxu0
        %v867 = vadd.f32 %v804, %v866
        %v868 = vpop.f32.mrf.mxu0
        %869 = vdwg.mxu0
        %vm870 = vcmask 64512
        %v871 = vsel %vm870, %v867, -inf
        %872 = vmax.xlane.f32.xlu0 %v871
        %v873 = vpop.xlane.xlu0 %872
        %v874 = vsub.f32 %v867, %v873
        %v875 = vmul.f32 %v874, 1.442695
        %v876 = vpow.pop %v875
        %v877 = vsel %vm870, %v876, 0.0
        %878 = vadd.xlane.f32.xlu0 %v877
        %v879 = vpop.xlane.xlu0 %878
        %v880 = vrcp.pop %v879
        %v881 = vmul.f32 %v876, %v880
        %v882 = vpack.c.bf16 %v881, %v881
        %883 = vrot.lane.b32.xlu0 %v847, 64
        %v884 = vpop.permute.xlu0 %883
        %v886 = vsel %vm870, %v882, 0
        %vm888 = vcmask 1043456
        %v890 = vsel %vm888, %v884, 0
        %892 = vmatpush.bf16.msra.mxu0 0
        %893 = vmatpush.bf16.msra.mxu0 0
        %894 = vmatpush.bf16.msra.mxu0 0
        %895 = vmatpush.bf16.msra.mxu0 0
        %896 = vmatpush.bf16.msra.mxu0 0
        %897 = vmatpush.bf16.msra.mxu0 0
        %898 = vmatpush.bf16.msra.mxu0 0
        %899 = vmatpush.bf16.msra.mxu0 %v890
        %900 = vmatmul.bf16.gmra.mxu0 %v886
        %v901 = vpop.f32.mrf.mxu0
        %v902 = vadd.f32 0.0, %v901
        %v903 = vpop.f32.mrf.mxu0
        %904 = vdwg.mxu0
        %905 = vst.msk [vmem:[#allocation3] sm:$0xff] %vm850, %v902
        %906 = vrot.lane.b32.xlu0 %v847, 112
        %v907 = vpop.permute.xlu0 %906
        %908 = vrot.lane.b32.xlu0 %v847, 80
        %v909 = vpop.permute.xlu0 %908
        %v911 = vsel %vm850, %v907, 0
        %v914 = vsel %vm850, %v909, 0
        %916 = vmatpush.bf16.xpose.msra.mxu0 0
        %917 = vmatpush.bf16.xpose.msra.mxu0 0
        %918 = vmatpush.bf16.xpose.msra.mxu0 0
        %919 = vmatpush.bf16.xpose.msra.mxu0 0
        %920 = vmatpush.bf16.xpose.msra.mxu0 0
        %921 = vmatpush.bf16.xpose.msra.mxu0 0
        %922 = vmatpush.bf16.xpose.msra.mxu0 0
        %923 = vmatpush.bf16.xpose.msra.mxu0 %v914
        %924 = vmatmul.bf16.gmra.mxu0 %v911
        %v925 = vpop.f32.mrf.mxu0
        %v926 = vadd.f32 %v804, %v925
        %v927 = vpop.f32.mrf.mxu0
        %928 = vdwg.mxu0
        %v929 = vsel %vm870, %v926, -inf
        %930 = vmax.xlane.f32.xlu0 %v929
        %v931 = vpop.xlane.xlu0 %930
        %v932 = vsub.f32 %v926, %v931
        %v933 = vmul.f32 %v932, 1.442695
        %v934 = vpow.pop %v933
        %v935 = vsel %vm870, %v934, 0.0
        %936 = vadd.xlane.f32.xlu0 %v935
        %v937 = vpop.xlane.xlu0 %936
        %v938 = vrcp.pop %v937
        %v939 = vmul.f32 %v934, %v938
        %v940 = vpack.c.bf16 %v939, %v939
        %941 = vrot.lane.b32.xlu0 %v847, 48
        %v942 = vpop.permute.xlu0 %941
        %v944 = vsel %vm870, %v940, 0
        %v947 = vsel %vm888, %v942, 0
        %949 = vmatpush.bf16.msra.mxu0 0
        %950 = vmatpush.bf16.msra.mxu0 0
        %951 = vmatpush.bf16.msra.mxu0 0
        %952 = vmatpush.bf16.msra.mxu0 0
        %953 = vmatpush.bf16.msra.mxu0 0
        %954 = vmatpush.bf16.msra.mxu0 0
        %955 = vmatpush.bf16.msra.mxu0 0
        %956 = vmatpush.bf16.msra.mxu0 %v947
        %957 = vmatmul.bf16.gmra.mxu0 %v944
        %v958 = vpop.f32.mrf.mxu0
        %v959 = vadd.f32 0.0, %v958
        %v960 = vpop.f32.mrf.mxu0
        %961 = vdwg.mxu0
        %963 = vrot.lane.b32.xlu0 %v959, 16
        %v964 = vpop.permute.xlu0 %963
        %vm966 = vcmask 261248
        %967 = vst.msk [vmem:[#allocation3] sm:$0xff] %vm966, %v964
        %v968 = vld [vmem:[#allocation3] sm:$0xff]
        %v969 = vpack.c.bf16 %v968, %v968
        %v970 = vld [vmem:[%s765] sm:$0xf]
        %v971 = vld [vmem:[%s765 + $0x4] sm:$0xf]
        %v972 = vld [vmem:[%s765 + $0x8] sm:$0xf]
        %v973 = vld [vmem:[%s765 + $0xc] sm:$0xf]
        %v974 = vld [vmem:[%s768] sm:$0x1]
        %v976 = vperm.slane %v974, 0
        %v982 = vunpack.c.l.b16 %v970
        %v983 = vunpack.c.l.b16 %v971
        %v984 = vunpack.c.l.b16 %v972
        %v985 = vunpack.c.l.b16 %v973
        %v986 = vpack.c.b16 %v983, %v982
        %v987 = vpack.c.b16 %v985, %v984
        %v991 = vsel %vm827, %v969, 0
        %993 = vmatpush.bf16.msra.mxu0 0
        %994 = vmatpush.bf16.msra.mxu0 0
        %995 = vmatpush.bf16.msra.mxu0 0
        %996 = vmatpush.bf16.msra.mxu0 0
        %997 = vmatpush.bf16.msra.mxu0 0
        %998 = vmatpush.bf16.msra.mxu0 0
        %999 = vmatpush.bf16.msra.mxu0 %v987
        %1000 = vmatpush.bf16.msra.mxu0 %v986
        %1001 = vmatmul.bf16.gmra.mxu0 %v991
        %v1002 = vpop.f32.mrf.mxu0
        %v1003 = vadd.f32 %v976, %v1002
        %v1004 = vpop.f32.mrf.mxu0
        %1005 = vdwg.mxu0
        %v1006 = vadd.f32 %v805, %v1003
        %v1007 = vld [vmem:[%s648] sm:$0x1]
        %v1008 = vld [vmem:[%s787] sm:$0x1]
        %v1009 = vsel %vm827, %v1006, 0.0
        %1010 = vadd.xlane.f32.xlu0 %v1009
        %v1011 = vpop.xlane.xlu0 %1010
        %v1012 = vrcp.pop 32.0
        %v1013 = vmul.f32 32.0, %v1012
        %v1014 = vsub.f32 1.0, %v1013
        %v1015 = vmul.f32 %v1012, %v1014
        %v1016 = vadd.f32 %v1012, %v1015
        %vm1017 = vweird.f32 %v1012
        %v1018 = vsel %vm1017, %v1012, %v1016
        %v1019 = vmul.f32 %v1011, %v1018
        %v1020 = vsub.f32 %v1006, %v1019
        %v1021 = vmul.f32 %v1020, %v1020
        %v1022 = vsel %vm827, %v1021, 0.0
        %1023 = vadd.xlane.f32.xlu0 %v1022
        %v1024 = vpop.xlane.xlu0 %1023
        %v1025 = vmul.f32 %v1024, %v1018
        %v1026 = vadd.f32 %v1025, 1e-05
        %v1027 = vrsqrt.pop %v1026
        %v1028 = vmul.f32 %v1027, %v1026
        %v1029 = vmul.f32 %v1028, %v1027
        %v1030 = vmul.f32 0.5, %v1029
        %v1031 = vsub.f32 1.5, %v1030
        %v1032 = vmul.f32 %v1027, %v1031
        %vm1033 = vweird.f32 %v1026
        %vm1034 = vweird.f32 %v1027
        %vm1035 = vmor %vm1033, %vm1034
        %v1036 = vsel %vm1035, %v1027, %v1032
        %v1037 = vmul.f32 %v1020, %v1036
        %v1039 = vperm.slane %v1007, 0
        %v1041 = vmul.f32 %v1037, %v1039
        %v1043 = vperm.slane %v1008, 0
        %v1045 = vadd.f32 %v1041, %v1043
        %v1046 = vpack.c.bf16 %v1045, %v1045
        %v1047 = vld [vmem:[%s773] sm:$0xf]
        %v1048 = vld [vmem:[%s773 + $0x4] sm:$0xf]
        %v1049 = vld [vmem:[%s773 + $0x8] sm:$0xf]
        %v1050 = vld [vmem:[%s773 + $0xc] sm:$0xf]
        %v1051 = vld [vmem:[%s776] sm:$0x1]
        %v1053 = vperm.slane %v1051, 0
        %v1059 = vunpack.c.l.b16 %v1047
        %v1060 = vunpack.c.l.b16 %v1048
        %v1061 = vunpack.c.l.b16 %v1049
        %v1062 = vunpack.c.l.b16 %v1050
        %v1063 = vpack.c.b16 %v1060, %v1059
        %v1064 = vpack.c.b16 %v1062, %v1061
        %v1068 = vsel %vm827, %v1046, 0
        %1070 = vmatpush.bf16.msra.mxu0 0
        %1071 = vmatpush.bf16.msra.mxu0 0
        %1072 = vmatpush.bf16.msra.mxu0 0
        %1073 = vmatpush.bf16.msra.mxu0 0
        %1074 = vmatpush.bf16.msra.mxu0 0
        %1075 = vmatpush.bf16.msra.mxu0 0
        %1076 = vmatpush.bf16.msra.mxu0 %v1064
        %1077 = vmatpush.bf16.msra.mxu0 %v1063
        %1078 = vmatmul.bf16.gmra.mxu0 %v1068
        %v1079 = vpop.f32.mrf.mxu0
        %v1080 = vadd.f32 %v1053, %v1079
        %v1081 = vpop.f32.mrf.mxu0
        %1082 = vdwg.mxu0
        %v1083 = vmax.f32 %v1080, 0.0
        %v1084 = vpack.c.bf16 %v1083, %v1083
        %v1085 = vld [vmem:[%s781] sm:$0xf]
        %v1086 = vld [vmem:[%s781 + $0x4] sm:$0xf]
        %v1087 = vld [vmem:[%s781 + $0x8] sm:$0xf]
        %v1088 = vld [vmem:[%s781 + $0xc] sm:$0xf]
        %v1089 = vld [vmem:[%s781 + $0x10] sm:$0xf]
        %v1090 = vld [vmem:[%s781 + $0x14] sm:$0xf]
        %v1091 = vld [vmem:[%s781 + $0x18] sm:$0xf]
        %v1092 = vld [vmem:[%s781 + $0x1c] sm:$0xf]
        %v1093 = vld [vmem:[%s784] sm:$0x1]
        %v1095 = vperm.slane %v1093, 0
        %v1105 = vunpack.c.l.b16 %v1085
        %v1106 = vunpack.c.l.b16 %v1086
        %v1107 = vunpack.c.l.b16 %v1087
        %v1108 = vunpack.c.l.b16 %v1088
        %v1109 = vunpack.c.l.b16 %v1089
        %v1110 = vunpack.c.l.b16 %v1090
        %v1111 = vunpack.c.l.b16 %v1091
        %v1112 = vunpack.c.l.b16 %v1092
        %v1113 = vpack.c.b16 %v1106, %v1105
        %v1114 = vpack.c.b16 %v1108, %v1107
        %v1115 = vpack.c.b16 %v1110, %v1109
        %v1116 = vpack.c.b16 %v1112, %v1111
        %vm1121 = vcmask 523264
        %v1123 = vsel %vm1121, %v1084, 0
        %1125 = vmatpush.bf16.msra.mxu0 0
        %1126 = vmatpush.bf16.msra.mxu0 0
        %1127 = vmatpush.bf16.msra.mxu0 0
        %1128 = vmatpush.bf16.msra.mxu0 0
        %1129 = vmatpush.bf16.msra.mxu0 %v1116
        %1130 = vmatpush.bf16.msra.mxu0 %v1115
        %1131 = vmatpush.bf16.msra.mxu0 %v1114
        %1132 = vmatpush.bf16.msra.mxu0 %v1113
        %1133 = vmatmul.bf16.gmra.mxu0 %v1123
        %v1134 = vpop.f32.mrf.mxu0
        %v1135 = vadd.f32 %v1095, %v1134
        %v1136 = vpop.f32.mrf.mxu0
        %1137 = vdwg.mxu0
        %v1138 = vadd.f32 %v1045, %v1135
        %v1139 = vld [vmem:[%s657] sm:$0x1]
        %v1140 = vld [vmem:[%s790] sm:$0x1]
        %v1141 = vsel %vm827, %v1138, 0.0
        %1142 = vadd.xlane.f32.xlu0 %v1141
        %v1143 = vpop.xlane.xlu0 %1142
        %v1144 = vmul.f32 %v1143, %v1018
        %v1145 = vsub.f32 %v1138, %v1144
        %v1146 = vmul.f32 %v1145, %v1145
        %v1147 = vsel %vm827, %v1146, 0.0
        %1148 = vadd.xlane.f32.xlu0 %v1147
        %v1149 = vpop.xlane.xlu0 %1148
        %v1150 = vmul.f32 %v1149, %v1018
        %v1151 = vadd.f32 %v1150, 1e-05
        %v1152 = vrsqrt.pop %v1151
        %v1153 = vmul.f32 %v1152, %v1151
        %v1154 = vmul.f32 %v1153, %v1152
        %v1155 = vmul.f32 0.5, %v1154
        %v1156 = vsub.f32 1.5, %v1155
        %v1157 = vmul.f32 %v1152, %v1156
        %vm1158 = vweird.f32 %v1151
        %vm1159 = vweird.f32 %v1152
        %vm1160 = vmor %vm1158, %vm1159
        %v1161 = vsel %vm1160, %v1152, %v1157
        %v1162 = vmul.f32 %v1145, %v1161
        %v1164 = vperm.slane %v1139, 0
        %v1166 = vmul.f32 %v1162, %v1164
        %v1168 = vperm.slane %v1140, 0
        %v1170 = vadd.f32 %v1166, %v1168
        %1171 = vst.msk [vmem:[#allocation2] sm:$0xff] %vm827, %v1170
        %p1172 = scmp.eq.s32.totalorder %s43, 1
        // Predicated region
        $region105: #{tpu_custom_call.1} parent=79 // pred_check
          %p1173 = pneg %p1172
        $region106: #{tpu_custom_call.1} parent=79 // pred_check_branch
          %1175 = sbr.rel (%p1173) target = $region108
        $region107: #{tpu_custom_call.1} parent=79 // pred_region
          %v1176 = vpack.c.bf16 %v1170, %v1170
          %v1177 = vld [vmem:[#allocation12] sm:$0xf]
          %v1178 = vld [vmem:[#allocation12 + $0x4] sm:$0xf]
          %v1179 = vld [vmem:[#allocation12 + $0x8] sm:$0xf]
          %v1180 = vld [vmem:[#allocation12 + $0xc] sm:$0xf]
          %v1181 = vld [vmem:[%s14] sm:$0x1]
          %v1183 = vshrl.u32 %v1176, 16
          %v1185 = vrot.slane %v1183, 3
          %v1190 = vunpack.c.l.b16 %v1177
          %v1191 = vunpack.c.l.b16 %v1178
          %v1192 = vunpack.c.l.b16 %v1179
          %v1193 = vunpack.c.l.b16 %v1180
          %v1194 = vpack.c.b16 %v1191, %v1190
          %v1195 = vpack.c.b16 %v1193, %v1192
          %v1199 = vsel %vm827, %v1185, 0
          %1201 = vmatpush.bf16.msra.mxu0 0
          %1202 = vmatpush.bf16.msra.mxu0 0
          %1203 = vmatpush.bf16.msra.mxu0 0
          %1204 = vmatpush.bf16.msra.mxu0 0
          %1205 = vmatpush.bf16.msra.mxu0 0
          %1206 = vmatpush.bf16.msra.mxu0 0
          %1207 = vmatpush.bf16.msra.mxu0 %v1195
          %1208 = vmatpush.bf16.msra.mxu0 %v1194
          %1209 = vmatmul.bf16.gmra.mxu0 %v1199
          %v1210 = vpop.f32.mrf.mxu0
          %v1211 = vadd.f32 %v1181, %v1210
          %v1212 = vpop.f32.mrf.mxu0
          %1213 = vdwg.mxu0
          %vm1214 = vcmp.lt.s32.totalorder %v802, 27
          %v1215 = vsel %vm1214, %v1211, -1e+30
          %vm1216 = vcmask 1040384
          %v1217 = vsel %vm1216, %v1215, -inf
          %1218 = vmax.xlane.f32.xlu0 %v1217
          %v1219 = vpop.xlane.xlu0 %1218
          %v1220 = vsub.f32 %v1215, %v1219
          %v1221 = vmul.f32 %v1220, 1.442695
          %v1222 = vpow.pop %v1221
          %v1223 = vsel %vm1216, %v1222, 0.0
          %1224 = vadd.xlane.f32.xlu0 %v1223
          %v1225 = vpop.xlane.xlu0 %1224
          %v1226 = vlog2.pop %v1225
          %v1227 = vmul.f32 %v1226, 0.6931472
          %v1228 = vsub.f32 %v1220, %v1227
          %1229 = vst [vmem:[%s755] sm:$0x1] %v1228
        $region108: #{tpu_custom_call.1} parent=79 // pred_fallthru
          _
        %s1230 = sand.u32 %s438, 1
        %s1231 = scalar_lea.sflag [#allocation6], %s1230
        %s1232 = sand.u32 %s438, 1
        %s1233 = scalar_lea.vmem [#allocation13], %s1232
        // Predicated region
        $region109: #{tpu_custom_call.1} parent=79 // pred_check
          %p1234 = pneg %p448
        $region110: #{tpu_custom_call.1} parent=79 // pred_check_branch
          %1236 = sbr.rel (%p1234) target = $region112
        $region111: #{tpu_custom_call.1} parent=79 // pred_region
          %1238 = vsyncadd %s1231, 0
          %s1239 = scalar_lea.hbm %s15, %s42
          %s1241 = sshll.u32 %s1233, 4
          %s1242 = int_to_ptr.vmem [resolvable:$true] %s1241
          %s1243 = sshll.u32 %s1239, 4
          %s1244 = int_to_ptr.hbm [resolvable:$true] %s1243
          %1246 = dma.vmem_to_hbm [thread:$0]  %s1242, 16, %s1244, %s1231
        $region112: #{tpu_custom_call.1} parent=79 // pred_fallthru
          _
      $region80: #{tpu_custom_call.1} parent=5 // pred_fallthru
        _
      %p1247 = scmp.le.s32.totalorder 2, %s33
      // Predicated region
      $region113: #{tpu_custom_call.1} parent=5 // pred_check
        %p1248 = pneg %p1247
      $region114: #{tpu_custom_call.1} parent=5 // pred_check_branch
        %1250 = sbr.rel (%p1248) target = $region116
      $region115: #{tpu_custom_call.1} parent=5 // pred_region
        %s1251 = ssub.s32 %s33, 2
        // Predicated region
        $region117: #{tpu_custom_call.1} parent=115 // pred_check
          %p1252 = pneg %p454
        $region118: #{tpu_custom_call.1} parent=115 // pred_check_branch
          %1254 = sbr.rel (%p1252) target = $region120
        $region119: #{tpu_custom_call.1} parent=115 // pred_region
          %s1255 = sand.u32 %s439, 1
          %s1256 = scalar_lea.sflag [#allocation6], %s1255
          %s1257 = sand.u32 %s439, 1
          %s1258 = scalar_lea.vmem [#allocation13], %s1257
          %1260 = dma.done %s1256, 16
        $region120: #{tpu_custom_call.1} parent=115 // pred_fallthru
          _
      $region116: #{tpu_custom_call.1} parent=5 // pred_fallthru
        _
    $region6: #{tpu_custom_call.1} parent=1 // loop_footer
      %s37 = sadd.s32 1, %s33
    $region7: #{tpu_custom_call.1} parent=1 // loop_footer_branch
      %32 = sbr.rel target = $region3
    $region8: #{tpu_custom_call.1} parent=1 // loop_exit
      _
    %1261 = vsyncpa [#allocation5], 1
    %s1262 = scalar_lea.sflag [#allocation5], 1
    %1263 = vsyncpa %s1262, 1
    %1264 = vsyncpa [#allocation8], 1
    %s1265 = scalar_lea.sflag [#allocation8], 1
    %1266 = vsyncpa %s1265, 1
    %1267 = vsyncpa [#allocation11], 1
    %s1268 = scalar_lea.sflag [#allocation11], 1
    %1269 = vsyncpa %s1268, 1
    %1270 = vsyncpa [#allocation6], 1
    %s1271 = scalar_lea.sflag [#allocation6], 1
    %1272 = vsyncpa %s1271, 1

</llo_original>
